<compile_context>
chip_gen: v7x
topology: tpu7x:2x2x1
jax: 0.10.0
libtpu: 0.0.40
codegen_flags: <defaults>
</compile_context>

<pallas_src>
import jax
import jax.numpy as jnp
from jax import lax
from jax.experimental import pallas as pl
from jax.experimental.pallas import tpu as pltpu

HIDDEN = 128


def _round_up(n, m):
    return ((n + m - 1) // m) * m


def _discriminator_kernel(x_ref, w1_ref, b1_ref, w2_ref, b2_ref, o_ref):
    # x_ref: (TB, F) bf16 | w1_ref: (F, 128) bf16 | b1_ref: (1, 128) f32
    # w2_ref: (1, 128) f32 | b2_ref: (1, 1) f32 in SMEM | o_ref: (1, TB) f32

    # Layer 1 on the MXU, f32 accumulation.
    h = jnp.dot(x_ref[...], w1_ref[...], preferred_element_type=jnp.float32)
    h = h + b1_ref[...]
    # LeakyReLU(0.01) on the VPU.
    h = jnp.where(h > 0, h, 0.01 * h)                           # (TB, 128) f32

    # Layer 2 (128 -> 1), computed transposed so the result is lane-dense:
    # contract the hidden axis of w2 (1,128) with the hidden axis of h
    # (TB,128) -> z (1, TB). The MXU is idle after layer 1, and keeping the
    # batch dim on lanes makes the epilogue + output store dense/unmasked.
    z = lax.dot_general(
        w2_ref[...], h,
        dimension_numbers=(((1,), (1,)), ((), ())),
        preferred_element_type=jnp.float32,
    ) + b2_ref[0, 0]                                            # (1, TB)

    # Numerically-stable sigmoid; exp and approx reciprocal both hit the EUP.
    e = jnp.exp(-jnp.abs(z))
    r = pl.reciprocal(1.0 + e, approx=True)
    o_ref[...] = jnp.where(z >= 0, r, 1.0 - r).astype(o_ref.dtype)


def discriminator_forward(x, params, *, block_b=512):
    """x: (B, F) float; params = (w1 (F,128) bf16, b1 (1,128) f32,
    w2 (1,128) f32, b2 (1,1) f32). Returns (B, 1) f32 scores."""
    w1, b1, w2, b2 = params
    B, F = x.shape
    assert w1.shape == (F, HIDDEN)

    # Row tile: multiple of 8, at most block_b, enough to cover tiny batches.
    tb = min(block_b, _round_up(B, 8))
    b_pad = _round_up(B, tb)
    if b_pad != B:
        x = jnp.pad(x, ((0, b_pad - B), (0, 0)))
    x = x.astype(jnp.bfloat16)
    grid = (b_pad // tb,)

    out = pl.pallas_call(
        _discriminator_kernel,
        out_shape=jax.ShapeDtypeStruct((1, b_pad), jnp.float32),
        grid=grid,
        in_specs=[
            pl.BlockSpec((tb, F), lambda i: (i, 0)),         # x: batch-tiled
            pl.BlockSpec((F, HIDDEN), lambda i: (0, 0)),     # w1: VMEM-resident
            pl.BlockSpec((1, HIDDEN), lambda i: (0, 0)),     # b1: VMEM-resident
            pl.BlockSpec((1, HIDDEN), lambda i: (0, 0)),     # w2: VMEM-resident
            pl.BlockSpec(memory_space=pltpu.MemorySpace.SMEM),   # b2: SMEM scalar
        ],
        # Lane-dense output slab: each grid step writes a contiguous (1, tb)
        # chunk of the (1, b_pad) result row.
        out_specs=pl.BlockSpec((1, tb), lambda i: (0, i)),
        compiler_params=pltpu.CompilerParams(
            dimension_semantics=("parallel",),
        ),
    )(x, w1, b1, w2, b2)
    # (1, b_pad) -> (b_pad, 1) is a free row-major reshape; drop padded rows.
    return out.reshape(b_pad, 1)[:B]


def init_discriminator_params(key, in_features, hidden=HIDDEN):
    """nn.Linear default init: U(-1/sqrt(fan_in), +1/sqrt(fan_in))."""
    k1, k2, k3, k4 = jax.random.split(key, 4)
    lim1 = 1.0 / jnp.sqrt(jnp.float32(in_features))
    lim2 = 1.0 / jnp.sqrt(jnp.float32(hidden))
    # w1 pre-transposed (in, hidden), stored bf16 (MXU-native operand dtype).
    w1 = jax.random.uniform(
        k1, (in_features, hidden), jnp.float32, -lim1, lim1
    ).astype(jnp.bfloat16)
    b1 = jax.random.uniform(k2, (1, hidden), jnp.float32, -lim1, lim1)
    # w2 stored as a (1, hidden) row for the transposed layer-2 matmul.
    w2 = jax.random.uniform(k3, (1, hidden), jnp.float32, -lim2, lim2)
    b2 = jax.random.uniform(k4, (1, 1), jnp.float32, -lim2, lim2)
    return w1, b1, w2, b2


if __name__ == "__main__":
    key = jax.random.PRNGKey(0)
    k_x, k_p = jax.random.split(key)

    # Small shapes consistent with the module: flattened 28x28 image -> score.
    # batch=300 with block_b=256 deliberately exercises the multi-tile grid
    # plus tail-padding path (512 padded rows, grid=(2,)).
    batch = 300
    in_features = 784

    x = jax.random.normal(k_x, (batch, in_features), jnp.float32)
    params = init_discriminator_params(k_p, in_features)

    out = jax.block_until_ready(discriminator_forward(x, params, block_b=256))

    # Plain-JAX reference with the same bf16 inputs / f32 accumulation.
    w1, b1, w2, b2 = params
    h_ref = jnp.dot(x.astype(jnp.bfloat16), w1,
                    preferred_element_type=jnp.float32) + b1
    h_ref = jnp.where(h_ref > 0, h_ref, 0.01 * h_ref)
    z_ref = jnp.dot(h_ref, w2.T, preferred_element_type=jnp.float32) + b2
    ref = jax.nn.sigmoid(z_ref)

    assert out.shape == (batch, 1)
    max_err = float(jnp.max(jnp.abs(out - ref)))
    assert max_err < 1e-2, f"max abs error {max_err}"

    print("KERNEL_OK")
</pallas_src>

<mosaic_0001>
module attributes {stable_mosaic.version = 11 : i64} {
  func.func @_discriminator_kernel(%arg0: i32, %arg1: memref<256x784xbf16, #tpu.memory_space<vmem>>, %arg2: memref<784x128xbf16, #tpu.memory_space<vmem>>, %arg3: memref<1x128xf32, #tpu.memory_space<vmem>>, %arg4: memref<1x128xf32, #tpu.memory_space<vmem>>, %arg5: memref<1x1xf32, #tpu.memory_space<smem>>, %arg6: memref<1x256xf32, #tpu.memory_space<vmem>>) attributes {dimension_semantics = [#tpu.dimension_semantics<parallel>], iteration_bounds = array<i64: 2>, scalar_prefetch = 0 : i64, scratch_operands = 0 : i64, tpu.core_type = #tpu.core_type<tc>, window_params = [{transform_indices = @transform_0, window_bounds = array<i64: 256, 784>}, {pipeline_mode = #tpu.pipeline_mode<synchronous>, transform_indices = @transform_1, window_bounds = array<i64: 784, 128>}, {pipeline_mode = #tpu.pipeline_mode<synchronous>, transform_indices = @transform_2, window_bounds = array<i64: 1, 128>}, {pipeline_mode = #tpu.pipeline_mode<synchronous>, transform_indices = @transform_3, window_bounds = array<i64: 1, 128>}, {transform_indices = @transform_4, window_bounds = array<i64: 1, 1>}, {transform_indices = @transform_5, window_bounds = array<i64: 1, 256>}]} {
    %c0 = arith.constant 0 : index
    %c0_0 = arith.constant 0 : index
    %0 = vector.load %arg1[%c0, %c0_0] : memref<256x784xbf16, #tpu.memory_space<vmem>>, vector<256x784xbf16>
    %c0_1 = arith.constant 0 : index
    %c0_2 = arith.constant 0 : index
    %1 = vector.load %arg2[%c0_1, %c0_2] : memref<784x128xbf16, #tpu.memory_space<vmem>>, vector<784x128xbf16>
    %cst = arith.constant dense<0.000000e+00> : vector<256x128xf32>
    %2 = tpu.matmul %0, %1, %cst {dimension_numbers = #tpu.dot_dimension_numbers<[1], [0], [0], [1], [0, 0, 1, 1], [], []>} : vector<256x784xbf16>, vector<784x128xbf16>, vector<256x128xf32> -> vector<256x128xf32>
    %c0_3 = arith.constant 0 : index
    %c0_4 = arith.constant 0 : index
    %3 = vector.load %arg3[%c0_3, %c0_4] : memref<1x128xf32, #tpu.memory_space<vmem>>, vector<1x128xf32>
    %4 = vector.broadcast %3 : vector<1x128xf32> to vector<256x128xf32>
    %5 = arith.addf %2, %4 : vector<256x128xf32>
    %cst_5 = arith.constant 0.000000e+00 : f32
    %6 = vector.broadcast %cst_5 : f32 to vector<256x128xf32>
    %7 = arith.cmpf ogt, %5, %6 : vector<256x128xf32>
    %cst_6 = arith.constant 0.00999999977 : f32
    %8 = vector.broadcast %cst_6 : f32 to vector<256x128xf32>
    %9 = arith.mulf %8, %5 : vector<256x128xf32>
    %10 = arith.select %7, %5, %9 : vector<256x128xi1>, vector<256x128xf32>
    %c0_7 = arith.constant 0 : index
    %c0_8 = arith.constant 0 : index
    %11 = vector.load %arg4[%c0_7, %c0_8] : memref<1x128xf32, #tpu.memory_space<vmem>>, vector<1x128xf32>
    %cst_9 = arith.constant dense<0.000000e+00> : vector<1x256xf32>
    %12 = tpu.matmul %11, %10, %cst_9 {dimension_numbers = #tpu.dot_dimension_numbers<[1], [1], [0], [0], [0, 0, 1, 0], [], []>} : vector<1x128xf32>, vector<256x128xf32>, vector<1x256xf32> -> vector<1x256xf32>
    %c0_10 = arith.constant 0 : index
    %c0_11 = arith.constant 0 : index
    %13 = memref.load %arg5[%c0_10, %c0_11] : memref<1x1xf32, #tpu.memory_space<smem>>
    %14 = vector.broadcast %13 : f32 to vector<1x256xf32>
    %15 = arith.addf %12, %14 : vector<1x256xf32>
    %16 = math.absf %15 : vector<1x256xf32>
    %cst_12 = arith.constant 0.000000e+00 : f32
    %17 = vector.broadcast %cst_12 : f32 to vector<1x256xf32>
    %18 = arith.subf %17, %16 : vector<1x256xf32>
    %19 = math.exp %18 : vector<1x256xf32>
    %cst_13 = arith.constant 1.000000e+00 : f32
    %20 = vector.broadcast %cst_13 : f32 to vector<1x256xf32>
    %21 = arith.addf %20, %19 : vector<1x256xf32>
    %22 = tpu.reciprocal %21 {approx = true} : vector<1x256xf32> -> vector<1x256xf32>
    %cst_14 = arith.constant 0.000000e+00 : f32
    %23 = vector.broadcast %cst_14 : f32 to vector<1x256xf32>
    %24 = arith.cmpf oge, %15, %23 : vector<1x256xf32>
    %cst_15 = arith.constant 1.000000e+00 : f32
    %25 = vector.broadcast %cst_15 : f32 to vector<1x256xf32>
    %26 = arith.subf %25, %22 : vector<1x256xf32>
    %27 = arith.select %24, %22, %26 : vector<1x256xi1>, vector<1x256xf32>
    %c0_16 = arith.constant 0 : index
    %c0_17 = arith.constant 0 : index
    %28 = vector.load %arg6[%c0_16, %c0_17] : memref<1x256xf32, #tpu.memory_space<vmem>>, vector<1x256xf32>
    tpu.vector_store %arg6[%c0_16, %c0_17], %27 {strides = array<i32>} : memref<1x256xf32, #tpu.memory_space<vmem>>, vector<1x256xf32>,
    return
  }
  func.func @transform_0(%arg0: i32) -> (i32, i32) {
    %c0_i32 = arith.constant 0 : i32
    %c0_i32_0 = arith.constant 0 : i32
    return %arg0, %c0_i32 : i32, i32
  }
  func.func @transform_1(%arg0: i32) -> (i32, i32) {
    %c0_i32 = arith.constant 0 : i32
    %c0_i32_0 = arith.constant 0 : i32
    %c0_i32_1 = arith.constant 0 : i32
    return %c0_i32, %c0_i32_0 : i32, i32
  }
  func.func @transform_2(%arg0: i32) -> (i32, i32) {
    %c0_i32 = arith.constant 0 : i32
    %c0_i32_0 = arith.constant 0 : i32
    %c0_i32_1 = arith.constant 0 : i32
    return %c0_i32, %c0_i32_0 : i32, i32
  }
  func.func @transform_3(%arg0: i32) -> (i32, i32) {
    %c0_i32 = arith.constant 0 : i32
    %c0_i32_0 = arith.constant 0 : i32
    %c0_i32_1 = arith.constant 0 : i32
    return %c0_i32, %c0_i32_0 : i32, i32
  }
  func.func @transform_4(%arg0: i32) -> (i32, i32) {
    %c0_i32 = arith.constant 0 : i32
    %c0_i32_0 = arith.constant 0 : i32
    %c0_i32_1 = arith.constant 0 : i32
    return %c0_i32, %c0_i32_0 : i32, i32
  }
  func.func @transform_5(%arg0: i32) -> (i32, i32) {
    %c0_i32 = arith.constant 0 : i32
    %c0_i32_0 = arith.constant 0 : i32
    return %c0_i32, %arg0 : i32, i32
  }
}

</mosaic_0001>

<llo_original>
// kernel: tpu_custom_call.1
$region0: #{tpu_custom_call.1}
  #allocation0 [shape = 'u32[]', space=smem, size = 0x4, offset = 0x4, fixed_abs, tag = 'smem constant byte address 0x4 - core index']
  #allocation1 [shape = 'u32[144,128]{1,0:T(1,128)}', space=vmem, size = 0x12000, scoped, tag = 'internal scratch']
  #allocation2 [shape = 'f32[1,1]{1,0:T(1,128)S(6)}', space=smem, size = 0x200, scoped, tag = 'scoped memory for tpu_custom_call.1']
  %s0 = inlined_call_operand.vmem [shape: bf16[512,784], index: 0, kind: input, shape index: {}]
  %s1 = inlined_call_operand.vmem [shape: bf16[784,128], index: 1, kind: input, shape index: {}]
  %s2 = inlined_call_operand.vmem [shape: f32[1,128], index: 2, kind: input, shape index: {}]
  %s3 = inlined_call_operand.vmem [shape: f32[1,128], index: 3, kind: input, shape index: {}]
  %s4 = inlined_call_operand.<no memory space> [shape: f32[1,1], index: 4, kind: input, shape index: {}]
  %s5 = inlined_call_operand.hbm [shape: f32[1,512], index: 5, kind: output, shape index: {}]
  %s6 = sld [smem:[#allocation0]]
  $region53: #{tpu_custom_call.1} parent=0
    _
  %s8 = ssub.s32 1, %s6
  %s9 = scalar_select 0, %s8, %s6
  %10 = sst [smem:[#allocation2]] %s4
  $region1: #{tpu_custom_call.1} parent=0
    #allocation3 [shape = 'u8[2048]{0}', space=vmem, size = 0x800, scoped, tag = 'output window, operand 0']
    #allocation4 [shape = 's32[2]{0}', space=sflag, size = 0x8, scoped, tag = 'scoped memory for tpu_custom_call.1']
    %11 = vsyncpa [#allocation4], 0
    %s12 = scalar_lea.sflag [#allocation4], 1
    %13 = vsyncpa %s12, 0
    loop: start=0, step=1, limit=4
    $region2: #{tpu_custom_call.1} parent=1 // loop_pre_header
      _
    $region3: #{tpu_custom_call.1} parent=1 // loop_header
      %s15 = sphi 0, %s19
      %p16 = scmp.ge.s32.totalorder %s15, 4
      %s25 = sphi 0, %s27
      %s28 = sphi 0, %s25
      %s29 = sphi 0, %s28
      %s45 = sphi 0, %s29
      %s49 = sphi 0, %s49
      %s51 = sphi 0, %s49
      %s52 = sphi 0, %s51
      %s66 = sphi 0, %s52
      %s70 = sphi 0, %s70
      %s72 = sphi 0, %s70
      %s73 = sphi 0, %s72
      %s87 = sphi 0, %s73
      %s91 = sphi 0, %s91
      %s93 = sphi 0, %s91
      %s94 = sphi 0, %s93
      %s108 = sphi 0, %s94
      %s112 = sphi 0, %s112
      %s114 = sphi 0, %s112
      %s115 = sphi 0, %s114
      %s129 = sphi 0, %s115
      %s135 = sphi 0, %s137
      %s138 = sphi 0, %s135
      %s139 = sphi 0, %s138
      %s155 = sphi 0, %s139
    $region4: #{tpu_custom_call.1} parent=1 // loop_header_branch
      %18 = sbr.rel (%p16) target = $region8
    $region5: #{tpu_custom_call.1} parent=1 // loop_body
      %s20 = ssub.s32 %s15, 1
      %s21 = ssub.s32 %s15, 2
      %s22 = sadd.s32 %s15, 1
      %s23 = ssub.s32 %s15, %s22
      %p24 = scmp.eq.s32.totalorder %s23, 0
      %s26 = sadd.s32 %s25, 1
      %s27 = scalar_select %p24, %s25, %s26
      %p30 = pneg %p24
      %p31 = scmp.eq.s32.totalorder %s15, 1
      %p32 = por %p30, %p31
      %p33 = scmp.ne.s32.totalorder %s25, %s28
      %p34 = scmp.eq.s32.totalorder %s15, 0
      %p35 = por %p33, %p34
      %p36 = scmp.ne.s32.totalorder %s25, %s28
      %p37 = scmp.eq.s32.totalorder %s20, 1
      %p38 = por %p36, %p37
      %p39 = scmp.ne.s32.totalorder %s28, %s29
      %p40 = scmp.eq.s32.totalorder %s20, 0
      %p41 = por %p39, %p40
      %p42 = scmp.ne.s32.totalorder %s28, %s29
      %p43 = scmp.eq.s32.totalorder %s21, 1
      %p44 = por %p42, %p43
      %p46 = scmp.ne.s32.totalorder %s29, %s45
      %p47 = scmp.eq.s32.totalorder %s21, 0
      %p48 = por %p46, %p47
      %s50 = sadd.s32 %s49, 1
      %p53 = scmp.eq.s32.totalorder %s15, 1
      %p54 = scmp.ne.s32.totalorder %s49, %s51
      %p55 = scmp.eq.s32.totalorder %s15, 0
      %p56 = por %p54, %p55
      %p57 = scmp.ne.s32.totalorder %s49, %s51
      %p58 = scmp.eq.s32.totalorder %s20, 1
      %p59 = por %p57, %p58
      %p60 = scmp.ne.s32.totalorder %s51, %s52
      %p61 = scmp.eq.s32.totalorder %s20, 0
      %p62 = por %p60, %p61
      %p63 = scmp.ne.s32.totalorder %s51, %s52
      %p64 = scmp.eq.s32.totalorder %s21, 1
      %p65 = por %p63, %p64
      %p67 = scmp.ne.s32.totalorder %s52, %s66
      %p68 = scmp.eq.s32.totalorder %s21, 0
      %p69 = por %p67, %p68
      %s71 = sadd.s32 %s70, 1
      %p74 = scmp.eq.s32.totalorder %s15, 1
      %p75 = scmp.ne.s32.totalorder %s70, %s72
      %p76 = scmp.eq.s32.totalorder %s15, 0
      %p77 = por %p75, %p76
      %p78 = scmp.ne.s32.totalorder %s70, %s72
      %p79 = scmp.eq.s32.totalorder %s20, 1
      %p80 = por %p78, %p79
      %p81 = scmp.ne.s32.totalorder %s72, %s73
      %p82 = scmp.eq.s32.totalorder %s20, 0
      %p83 = por %p81, %p82
      %p84 = scmp.ne.s32.totalorder %s72, %s73
      %p85 = scmp.eq.s32.totalorder %s21, 1
      %p86 = por %p84, %p85
      %p88 = scmp.ne.s32.totalorder %s73, %s87
      %p89 = scmp.eq.s32.totalorder %s21, 0
      %p90 = por %p88, %p89
      %s92 = sadd.s32 %s91, 1
      %p95 = scmp.eq.s32.totalorder %s15, 1
      %p96 = scmp.ne.s32.totalorder %s91, %s93
      %p97 = scmp.eq.s32.totalorder %s15, 0
      %p98 = por %p96, %p97
      %p99 = scmp.ne.s32.totalorder %s91, %s93
      %p100 = scmp.eq.s32.totalorder %s20, 1
      %p101 = por %p99, %p100
      %p102 = scmp.ne.s32.totalorder %s93, %s94
      %p103 = scmp.eq.s32.totalorder %s20, 0
      %p104 = por %p102, %p103
      %p105 = scmp.ne.s32.totalorder %s93, %s94
      %p106 = scmp.eq.s32.totalorder %s21, 1
      %p107 = por %p105, %p106
      %p109 = scmp.ne.s32.totalorder %s94, %s108
      %p110 = scmp.eq.s32.totalorder %s21, 0
      %p111 = por %p109, %p110
      %s113 = sadd.s32 %s112, 1
      %p116 = scmp.eq.s32.totalorder %s15, 1
      %p117 = scmp.ne.s32.totalorder %s112, %s114
      %p118 = scmp.eq.s32.totalorder %s15, 0
      %p119 = por %p117, %p118
      %p120 = scmp.ne.s32.totalorder %s112, %s114
      %p121 = scmp.eq.s32.totalorder %s20, 1
      %p122 = por %p120, %p121
      %p123 = scmp.ne.s32.totalorder %s114, %s115
      %p124 = scmp.eq.s32.totalorder %s20, 0
      %p125 = por %p123, %p124
      %p126 = scmp.ne.s32.totalorder %s114, %s115
      %p127 = scmp.eq.s32.totalorder %s21, 1
      %p128 = por %p126, %p127
      %p130 = scmp.ne.s32.totalorder %s115, %s129
      %p131 = scmp.eq.s32.totalorder %s21, 0
      %p132 = por %p130, %p131
      %s133 = ssub.s32 %s15, %s22
      %p134 = scmp.eq.s32.totalorder %s133, 0
      %s136 = sadd.s32 %s135, 1
      %s137 = scalar_select %p134, %s135, %s136
      %p140 = pneg %p134
      %p141 = scmp.eq.s32.totalorder %s15, 1
      %p142 = por %p140, %p141
      %p143 = scmp.ne.s32.totalorder %s135, %s138
      %p144 = scmp.eq.s32.totalorder %s15, 0
      %p145 = por %p143, %p144
      %p146 = scmp.ne.s32.totalorder %s135, %s138
      %p147 = scmp.eq.s32.totalorder %s20, 1
      %p148 = por %p146, %p147
      %p149 = scmp.ne.s32.totalorder %s138, %s139
      %p150 = scmp.eq.s32.totalorder %s20, 0
      %p151 = por %p149, %p150
      %p152 = scmp.ne.s32.totalorder %s138, %s139
      %p153 = scmp.eq.s32.totalorder %s21, 1
      %p154 = por %p152, %p153
      %p156 = scmp.ne.s32.totalorder %s139, %s155
      %p157 = scmp.eq.s32.totalorder %s21, 0
      %p158 = por %p156, %p157
      %p159 = scmp.le.s32.totalorder 1, %s15
      %p160 = scmp.lt.s32.totalorder %s15, 3
      %p161 = pnand %p159, %p160
      %p162 = pneg %p161
      // Predicated region
      $region9: #{tpu_custom_call.1} parent=5 // pred_check
        _
      $region10: #{tpu_custom_call.1} parent=5 // pred_check_branch
        %164 = sbr.rel (%p161) target = $region12
      $region11: #{tpu_custom_call.1} parent=5 // pred_region
        %s165 = ssub.s32 %s15, 1
        // Predicated region
        $region13: #{tpu_custom_call.1} parent=11 // pred_check
          %p166 = pneg %p62
        $region14: #{tpu_custom_call.1} parent=11 // pred_check_branch
          %168 = sbr.rel (%p166) target = $region16
        $region15: #{tpu_custom_call.1} parent=11 // pred_region
          _
        $region16: #{tpu_custom_call.1} parent=11 // pred_fallthru
          _
        // Predicated region
        $region17: #{tpu_custom_call.1} parent=11 // pred_check
          %p169 = pneg %p83
        $region18: #{tpu_custom_call.1} parent=11 // pred_check_branch
          %171 = sbr.rel (%p169) target = $region20
        $region19: #{tpu_custom_call.1} parent=11 // pred_region
          _
        $region20: #{tpu_custom_call.1} parent=11 // pred_fallthru
          _
        // Predicated region
        $region21: #{tpu_custom_call.1} parent=11 // pred_check
          %p172 = pneg %p104
        $region22: #{tpu_custom_call.1} parent=11 // pred_check_branch
          %174 = sbr.rel (%p172) target = $region24
        $region23: #{tpu_custom_call.1} parent=11 // pred_region
          _
        $region24: #{tpu_custom_call.1} parent=11 // pred_fallthru
          _
        // Predicated region
        $region25: #{tpu_custom_call.1} parent=11 // pred_check
          %p175 = pneg %p125
        $region26: #{tpu_custom_call.1} parent=11 // pred_check_branch
          %177 = sbr.rel (%p175) target = $region28
        $region27: #{tpu_custom_call.1} parent=11 // pred_region
          _
        $region28: #{tpu_custom_call.1} parent=11 // pred_fallthru
          _
      $region12: #{tpu_custom_call.1} parent=5 // pred_fallthru
        _
      %p178 = scmp.lt.s32.totalorder %s15, 2
      // Predicated region
      $region29: #{tpu_custom_call.1} parent=5 // pred_check
        %p179 = pneg %p178
      $region30: #{tpu_custom_call.1} parent=5 // pred_check_branch
        %181 = sbr.rel (%p179) target = $region32
      $region31: #{tpu_custom_call.1} parent=5 // pred_region
        // Predicated region
        $region33: #{tpu_custom_call.1} parent=31 // pred_check
          %p182 = pneg %p35
        $region34: #{tpu_custom_call.1} parent=31 // pred_check_branch
          %184 = sbr.rel (%p182) target = $region36
        $region35: #{tpu_custom_call.1} parent=31 // pred_region
          %s185 = smul.u32 32, %s15
          %p186 = scmp.lt.s32.totalorder %s185, 63
          %s187 = scalar_select %p186, %s185, 63
          %s188 = smul.addr %s187, 7
          %s189 = smul.addr %s188, 4
          %s190 = scalar_lea.vmem %s0, %s189
          %s191 = smul.u32 32, %s15
        $region36: #{tpu_custom_call.1} parent=31 // pred_fallthru
          _
      $region32: #{tpu_custom_call.1} parent=5 // pred_fallthru
        _
      %p192 = scmp.le.s32.totalorder 1, %s15
      %p193 = scmp.lt.s32.totalorder %s15, 3
      %p194 = pnand %p192, %p193
      %p195 = pneg %p194
      // Predicated region
      $region37: #{tpu_custom_call.1} parent=5 // pred_check
        _
      $region38: #{tpu_custom_call.1} parent=5 // pred_check_branch
        %197 = sbr.rel (%p194) target = $region40
      $region39: #{tpu_custom_call.1} parent=5 // pred_region
        %s198 = ssub.s32 %s15, 1
        %s199 = smul.u32 32, %s20
        %p200 = scmp.lt.s32.totalorder %s199, 63
        %s201 = scalar_select %p200, %s199, 63
        %s202 = smul.addr %s201, 7
        %s203 = smul.addr %s202, 4
        %s204 = scalar_lea.vmem %s0, %s203
        %p205 = pneg %p41
        %p206 = pneg %p38
        %p207 = pneg %p62
        %p208 = pneg %p59
        %p209 = pneg %p83
        %p210 = pneg %p80
        %p211 = pneg %p104
        %p212 = pneg %p101
        %p213 = pneg %p125
        %p214 = pneg %p122
        %p215 = pneg %p151
        %p216 = pneg %p148
        %s217 = sand.u32 %s138, 1
        %s218 = scalar_lea.sflag [#allocation4], %s217
        %s219 = sand.u32 %s138, 1
        %s220 = smul.addr %s219, 2
        %s221 = scalar_lea.vmem [#allocation3], %s220
        %s222 = smul.u32 32, %s20
        %p223 = scmp.lt.s32.totalorder %s222, 63
        %s224 = scalar_select %p223, %s222, 63
        %s225 = smul.addr %s224, 7
        %s226 = smul.addr %s225, 4
        %s227 = scalar_lea.vmem %s0, %s226
        %s228 = smul.u32 32, %s20
        %s229 = smul.u32 2, %s20
        %v231 = vld [vmem:[%s227] sm:$0xff]
        %v232 = vld [vmem:[%s227 + $0x8] sm:$0xff]
        %v233 = vld [vmem:[%s227 + $0x10] sm:$0xff]
        %v234 = vld [vmem:[%s227 + $0x18] sm:$0xf]
        %v235 = vld [vmem:[%s227 + $0x1c] sm:$0xff]
        %v236 = vld [vmem:[%s227 + $0x24] sm:$0xff]
        %v237 = vld [vmem:[%s227 + $0x2c] sm:$0xff]
        %v238 = vld [vmem:[%s227 + $0x34] sm:$0xf]
        %v239 = vld [vmem:[%s227 + $0x38] sm:$0xff]
        %v240 = vld [vmem:[%s227 + $0x40] sm:$0xff]
        %v241 = vld [vmem:[%s227 + $0x48] sm:$0xff]
        %v242 = vld [vmem:[%s227 + $0x50] sm:$0xf]
        %v243 = vld [vmem:[%s227 + $0x54] sm:$0xff]
        %v244 = vld [vmem:[%s227 + $0x5c] sm:$0xff]
        %v245 = vld [vmem:[%s227 + $0x64] sm:$0xff]
        %v246 = vld [vmem:[%s227 + $0x6c] sm:$0xf]
        %v247 = vld [vmem:[%s227 + $0x70] sm:$0xff]
        %v248 = vld [vmem:[%s227 + $0x78] sm:$0xff]
        %v249 = vld [vmem:[%s227 + $0x80] sm:$0xff]
        %v250 = vld [vmem:[%s227 + $0x88] sm:$0xf]
        %v251 = vld [vmem:[%s227 + $0x8c] sm:$0xff]
        %v252 = vld [vmem:[%s227 + $0x94] sm:$0xff]
        %v253 = vld [vmem:[%s227 + $0x9c] sm:$0xff]
        %v254 = vld [vmem:[%s227 + $0xa4] sm:$0xf]
        %v255 = vld [vmem:[%s227 + $0xa8] sm:$0xff]
        %v256 = vld [vmem:[%s227 + $0xb0] sm:$0xff]
        %v257 = vld [vmem:[%s227 + $0xb8] sm:$0xff]
        %v258 = vld [vmem:[%s227 + $0xc0] sm:$0xf]
        %v259 = vld [vmem:[%s227 + $0xc4] sm:$0xff]
        %v260 = vld [vmem:[%s227 + $0xcc] sm:$0xff]
        %v261 = vld [vmem:[%s227 + $0xd4] sm:$0xff]
        %v262 = vld [vmem:[%s227 + $0xdc] sm:$0xf]
        %v263 = vld [vmem:[%s227 + $0xe0] sm:$0xff]
        %v264 = vld [vmem:[%s227 + $0xe8] sm:$0xff]
        %v265 = vld [vmem:[%s227 + $0xf0] sm:$0xff]
        %v266 = vld [vmem:[%s227 + $0xf8] sm:$0xf]
        %v267 = vld [vmem:[%s227 + $0xfc] sm:$0xff]
        %v268 = vld [vmem:[%s227 + $0x104] sm:$0xff]
        %v269 = vld [vmem:[%s227 + $0x10c] sm:$0xff]
        %v270 = vld [vmem:[%s227 + $0x114] sm:$0xf]
        %v271 = vld [vmem:[%s227 + $0x118] sm:$0xff]
        %v272 = vld [vmem:[%s227 + $0x120] sm:$0xff]
        %v273 = vld [vmem:[%s227 + $0x128] sm:$0xff]
        %v274 = vld [vmem:[%s227 + $0x130] sm:$0xf]
        %v275 = vld [vmem:[%s227 + $0x134] sm:$0xff]
        %v276 = vld [vmem:[%s227 + $0x13c] sm:$0xff]
        %v277 = vld [vmem:[%s227 + $0x144] sm:$0xff]
        %v278 = vld [vmem:[%s227 + $0x14c] sm:$0xf]
        %v279 = vld [vmem:[%s227 + $0x150] sm:$0xff]
        %v280 = vld [vmem:[%s227 + $0x158] sm:$0xff]
        %v281 = vld [vmem:[%s227 + $0x160] sm:$0xff]
        %v282 = vld [vmem:[%s227 + $0x168] sm:$0xf]
        %v283 = vld [vmem:[%s227 + $0x16c] sm:$0xff]
        %v284 = vld [vmem:[%s227 + $0x174] sm:$0xff]
        %v285 = vld [vmem:[%s227 + $0x17c] sm:$0xff]
        %v286 = vld [vmem:[%s227 + $0x184] sm:$0xf]
        %v287 = vld [vmem:[%s227 + $0x188] sm:$0xff]
        %v288 = vld [vmem:[%s227 + $0x190] sm:$0xff]
        %v289 = vld [vmem:[%s227 + $0x198] sm:$0xff]
        %v290 = vld [vmem:[%s227 + $0x1a0] sm:$0xf]
        %v291 = vld [vmem:[%s227 + $0x1a4] sm:$0xff]
        %v292 = vld [vmem:[%s227 + $0x1ac] sm:$0xff]
        %v293 = vld [vmem:[%s227 + $0x1b4] sm:$0xff]
        %v294 = vld [vmem:[%s227 + $0x1bc] sm:$0xf]
        %v295 = vld [vmem:[%s227 + $0x1c0] sm:$0xff]
        %v296 = vld [vmem:[%s227 + $0x1c8] sm:$0xff]
        %v297 = vld [vmem:[%s227 + $0x1d0] sm:$0xff]
        %v298 = vld [vmem:[%s227 + $0x1d8] sm:$0xf]
        %v299 = vld [vmem:[%s227 + $0x1dc] sm:$0xff]
        %v300 = vld [vmem:[%s227 + $0x1e4] sm:$0xff]
        %v301 = vld [vmem:[%s227 + $0x1ec] sm:$0xff]
        %v302 = vld [vmem:[%s227 + $0x1f4] sm:$0xf]
        %v303 = vld [vmem:[%s227 + $0x1f8] sm:$0xff]
        %v304 = vld [vmem:[%s227 + $0x200] sm:$0xff]
        %v305 = vld [vmem:[%s227 + $0x208] sm:$0xff]
        %v306 = vld [vmem:[%s227 + $0x210] sm:$0xf]
        %v307 = vld [vmem:[%s227 + $0x214] sm:$0xff]
        %v308 = vld [vmem:[%s227 + $0x21c] sm:$0xff]
        %v309 = vld [vmem:[%s227 + $0x224] sm:$0xff]
        %v310 = vld [vmem:[%s227 + $0x22c] sm:$0xf]
        %v311 = vld [vmem:[%s227 + $0x230] sm:$0xff]
        %v312 = vld [vmem:[%s227 + $0x238] sm:$0xff]
        %v313 = vld [vmem:[%s227 + $0x240] sm:$0xff]
        %v314 = vld [vmem:[%s227 + $0x248] sm:$0xf]
        %v315 = vld [vmem:[%s227 + $0x24c] sm:$0xff]
        %v316 = vld [vmem:[%s227 + $0x254] sm:$0xff]
        %v317 = vld [vmem:[%s227 + $0x25c] sm:$0xff]
        %v318 = vld [vmem:[%s227 + $0x264] sm:$0xf]
        %v319 = vld [vmem:[%s227 + $0x268] sm:$0xff]
        %v320 = vld [vmem:[%s227 + $0x270] sm:$0xff]
        %v321 = vld [vmem:[%s227 + $0x278] sm:$0xff]
        %v322 = vld [vmem:[%s227 + $0x280] sm:$0xf]
        %v323 = vld [vmem:[%s227 + $0x284] sm:$0xff]
        %v324 = vld [vmem:[%s227 + $0x28c] sm:$0xff]
        %v325 = vld [vmem:[%s227 + $0x294] sm:$0xff]
        %v326 = vld [vmem:[%s227 + $0x29c] sm:$0xf]
        %v327 = vld [vmem:[%s227 + $0x2a0] sm:$0xff]
        %v328 = vld [vmem:[%s227 + $0x2a8] sm:$0xff]
        %v329 = vld [vmem:[%s227 + $0x2b0] sm:$0xff]
        %v330 = vld [vmem:[%s227 + $0x2b8] sm:$0xf]
        %v331 = vld [vmem:[%s227 + $0x2bc] sm:$0xff]
        %v332 = vld [vmem:[%s227 + $0x2c4] sm:$0xff]
        %v333 = vld [vmem:[%s227 + $0x2cc] sm:$0xff]
        %v334 = vld [vmem:[%s227 + $0x2d4] sm:$0xf]
        %v335 = vld [vmem:[%s227 + $0x2d8] sm:$0xff]
        %v336 = vld [vmem:[%s227 + $0x2e0] sm:$0xff]
        %v337 = vld [vmem:[%s227 + $0x2e8] sm:$0xff]
        %v338 = vld [vmem:[%s227 + $0x2f0] sm:$0xf]
        %v339 = vld [vmem:[%s227 + $0x2f4] sm:$0xff]
        %v340 = vld [vmem:[%s227 + $0x2fc] sm:$0xff]
        %v341 = vld [vmem:[%s227 + $0x304] sm:$0xff]
        %v342 = vld [vmem:[%s227 + $0x30c] sm:$0xf]
        %v343 = vld [vmem:[%s227 + $0x310] sm:$0xff]
        %v344 = vld [vmem:[%s227 + $0x318] sm:$0xff]
        %v345 = vld [vmem:[%s227 + $0x320] sm:$0xff]
        %v346 = vld [vmem:[%s227 + $0x328] sm:$0xf]
        %v347 = vld [vmem:[%s227 + $0x32c] sm:$0xff]
        %v348 = vld [vmem:[%s227 + $0x334] sm:$0xff]
        %v349 = vld [vmem:[%s227 + $0x33c] sm:$0xff]
        %v350 = vld [vmem:[%s227 + $0x344] sm:$0xf]
        %v351 = vld [vmem:[%s227 + $0x348] sm:$0xff]
        %v352 = vld [vmem:[%s227 + $0x350] sm:$0xff]
        %v353 = vld [vmem:[%s227 + $0x358] sm:$0xff]
        %v354 = vld [vmem:[%s227 + $0x360] sm:$0xf]
        %v355 = vld [vmem:[%s227 + $0x364] sm:$0xff]
        %v356 = vld [vmem:[%s227 + $0x36c] sm:$0xff]
        %v357 = vld [vmem:[%s227 + $0x374] sm:$0xff]
        %v358 = vld [vmem:[%s227 + $0x37c] sm:$0xf]
        %v359 = vld [vmem:[%s1] sm:$0xf]
        %v360 = vld [vmem:[%s1 + $0x4] sm:$0xf]
        %v361 = vld [vmem:[%s1 + $0x8] sm:$0xf]
        %v362 = vld [vmem:[%s1 + $0xc] sm:$0xf]
        %v363 = vld [vmem:[%s1 + $0x10] sm:$0xf]
        %v364 = vld [vmem:[%s1 + $0x14] sm:$0xf]
        %v365 = vld [vmem:[%s1 + $0x18] sm:$0xf]
        %v366 = vld [vmem:[%s1 + $0x1c] sm:$0xf]
        %v367 = vld [vmem:[%s1 + $0x20] sm:$0xf]
        %v368 = vld [vmem:[%s1 + $0x24] sm:$0xf]
        %v369 = vld [vmem:[%s1 + $0x28] sm:$0xf]
        %v370 = vld [vmem:[%s1 + $0x2c] sm:$0xf]
        %v371 = vld [vmem:[%s1 + $0x30] sm:$0xf]
        %v372 = vld [vmem:[%s1 + $0x34] sm:$0xf]
        %v373 = vld [vmem:[%s1 + $0x38] sm:$0xf]
        %v374 = vld [vmem:[%s1 + $0x3c] sm:$0xf]
        %v375 = vld [vmem:[%s1 + $0x40] sm:$0xf]
        %v376 = vld [vmem:[%s1 + $0x44] sm:$0xf]
        %v377 = vld [vmem:[%s1 + $0x48] sm:$0xf]
        %v378 = vld [vmem:[%s1 + $0x4c] sm:$0xf]
        %v379 = vld [vmem:[%s1 + $0x50] sm:$0xf]
        %v380 = vld [vmem:[%s1 + $0x54] sm:$0xf]
        %v381 = vld [vmem:[%s1 + $0x58] sm:$0xf]
        %v382 = vld [vmem:[%s1 + $0x5c] sm:$0xf]
        %v383 = vld [vmem:[%s1 + $0x60] sm:$0xf]
        %v384 = vld [vmem:[%s1 + $0x64] sm:$0xf]
        %v385 = vld [vmem:[%s1 + $0x68] sm:$0xf]
        %v386 = vld [vmem:[%s1 + $0x6c] sm:$0xf]
        %v387 = vld [vmem:[%s1 + $0x70] sm:$0xf]
        %v388 = vld [vmem:[%s1 + $0x74] sm:$0xf]
        %v389 = vld [vmem:[%s1 + $0x78] sm:$0xf]
        %v390 = vld [vmem:[%s1 + $0x7c] sm:$0xf]
        %v391 = vld [vmem:[%s1 + $0x80] sm:$0xf]
        %v392 = vld [vmem:[%s1 + $0x84] sm:$0xf]
        %v393 = vld [vmem:[%s1 + $0x88] sm:$0xf]
        %v394 = vld [vmem:[%s1 + $0x8c] sm:$0xf]
        %v395 = vld [vmem:[%s1 + $0x90] sm:$0xf]
        %v396 = vld [vmem:[%s1 + $0x94] sm:$0xf]
        %v397 = vld [vmem:[%s1 + $0x98] sm:$0xf]
        %v398 = vld [vmem:[%s1 + $0x9c] sm:$0xf]
        %v399 = vld [vmem:[%s1 + $0xa0] sm:$0xf]
        %v400 = vld [vmem:[%s1 + $0xa4] sm:$0xf]
        %v401 = vld [vmem:[%s1 + $0xa8] sm:$0xf]
        %v402 = vld [vmem:[%s1 + $0xac] sm:$0xf]
        %v403 = vld [vmem:[%s1 + $0xb0] sm:$0xf]
        %v404 = vld [vmem:[%s1 + $0xb4] sm:$0xf]
        %v405 = vld [vmem:[%s1 + $0xb8] sm:$0xf]
        %v406 = vld [vmem:[%s1 + $0xbc] sm:$0xf]
        %v407 = vld [vmem:[%s1 + $0xc0] sm:$0xf]
        %v408 = vld [vmem:[%s1 + $0xc4] sm:$0xf]
        %v409 = vld [vmem:[%s1 + $0xc8] sm:$0xf]
        %v410 = vld [vmem:[%s1 + $0xcc] sm:$0xf]
        %v411 = vld [vmem:[%s1 + $0xd0] sm:$0xf]
        %v412 = vld [vmem:[%s1 + $0xd4] sm:$0xf]
        %v413 = vld [vmem:[%s1 + $0xd8] sm:$0xf]
        %v414 = vld [vmem:[%s1 + $0xdc] sm:$0xf]
        %v415 = vld [vmem:[%s1 + $0xe0] sm:$0xf]
        %v416 = vld [vmem:[%s1 + $0xe4] sm:$0xf]
        %v417 = vld [vmem:[%s1 + $0xe8] sm:$0xf]
        %v418 = vld [vmem:[%s1 + $0xec] sm:$0xf]
        %v419 = vld [vmem:[%s1 + $0xf0] sm:$0xf]
        %v420 = vld [vmem:[%s1 + $0xf4] sm:$0xf]
        %v421 = vld [vmem:[%s1 + $0xf8] sm:$0xf]
        %v422 = vld [vmem:[%s1 + $0xfc] sm:$0xf]
        %v423 = vld [vmem:[%s1 + $0x100] sm:$0xf]
        %v424 = vld [vmem:[%s1 + $0x104] sm:$0xf]
        %v425 = vld [vmem:[%s1 + $0x108] sm:$0xf]
        %v426 = vld [vmem:[%s1 + $0x10c] sm:$0xf]
        %v427 = vld [vmem:[%s1 + $0x110] sm:$0xf]
        %v428 = vld [vmem:[%s1 + $0x114] sm:$0xf]
        %v429 = vld [vmem:[%s1 + $0x118] sm:$0xf]
        %v430 = vld [vmem:[%s1 + $0x11c] sm:$0xf]
        %v431 = vld [vmem:[%s1 + $0x120] sm:$0xf]
        %v432 = vld [vmem:[%s1 + $0x124] sm:$0xf]
        %v433 = vld [vmem:[%s1 + $0x128] sm:$0xf]
        %v434 = vld [vmem:[%s1 + $0x12c] sm:$0xf]
        %v435 = vld [vmem:[%s1 + $0x130] sm:$0xf]
        %v436 = vld [vmem:[%s1 + $0x134] sm:$0xf]
        %v437 = vld [vmem:[%s1 + $0x138] sm:$0xf]
        %v438 = vld [vmem:[%s1 + $0x13c] sm:$0xf]
        %v439 = vld [vmem:[%s1 + $0x140] sm:$0xf]
        %v440 = vld [vmem:[%s1 + $0x144] sm:$0xf]
        %v441 = vld [vmem:[%s1 + $0x148] sm:$0xf]
        %v442 = vld [vmem:[%s1 + $0x14c] sm:$0xf]
        %v443 = vld [vmem:[%s1 + $0x150] sm:$0xf]
        %v444 = vld [vmem:[%s1 + $0x154] sm:$0xf]
        %v445 = vld [vmem:[%s1 + $0x158] sm:$0xf]
        %v446 = vld [vmem:[%s1 + $0x15c] sm:$0xf]
        %v447 = vld [vmem:[%s1 + $0x160] sm:$0xf]
        %v448 = vld [vmem:[%s1 + $0x164] sm:$0xf]
        %v449 = vld [vmem:[%s1 + $0x168] sm:$0xf]
        %v450 = vld [vmem:[%s1 + $0x16c] sm:$0xf]
        %v451 = vld [vmem:[%s1 + $0x170] sm:$0xf]
        %v452 = vld [vmem:[%s1 + $0x174] sm:$0xf]
        %v453 = vld [vmem:[%s1 + $0x178] sm:$0xf]
        %v454 = vld [vmem:[%s1 + $0x17c] sm:$0xf]
        %v455 = vld [vmem:[%s1 + $0x180] sm:$0xf]
        %v456 = vld [vmem:[%s1 + $0x184] sm:$0xf]
        %v457 = vld [vmem:[%s2] sm:$0x1]
        %v459 = vlaneseq
        %v460 = vshrl.u32 %v459, 7
        %v461 = vsub.s32 0, %v460
        %v462 = vrot.slane %v457, %v461
        %v592 = vunpack.c.l.b16 %v231
        %v593 = vunpack.c.h.b16 %v231
        %v594 = vunpack.c.l.b16 %v232
        %v595 = vunpack.c.h.b16 %v232
        %v596 = vunpack.c.l.b16 %v233
        %v597 = vunpack.c.h.b16 %v233
        %v598 = vunpack.c.l.b16 %v234
        %v599 = vunpack.c.l.b16 %v235
        %v600 = vunpack.c.h.b16 %v235
        %v601 = vunpack.c.l.b16 %v236
        %v602 = vunpack.c.h.b16 %v236
        %v603 = vunpack.c.l.b16 %v237
        %v604 = vunpack.c.h.b16 %v237
        %v605 = vunpack.c.l.b16 %v238
        %v606 = vunpack.c.l.b16 %v239
        %v607 = vunpack.c.h.b16 %v239
        %v608 = vunpack.c.l.b16 %v240
        %v609 = vunpack.c.h.b16 %v240
        %v610 = vunpack.c.l.b16 %v241
        %v611 = vunpack.c.h.b16 %v241
        %v612 = vunpack.c.l.b16 %v242
        %v613 = vunpack.c.l.b16 %v243
        %v614 = vunpack.c.h.b16 %v243
        %v615 = vunpack.c.l.b16 %v244
        %v616 = vunpack.c.h.b16 %v244
        %v617 = vunpack.c.l.b16 %v245
        %v618 = vunpack.c.h.b16 %v245
        %v619 = vunpack.c.l.b16 %v246
        %v620 = vunpack.c.l.b16 %v247
        %v621 = vunpack.c.h.b16 %v247
        %v622 = vunpack.c.l.b16 %v248
        %v623 = vunpack.c.h.b16 %v248
        %v624 = vunpack.c.l.b16 %v249
        %v625 = vunpack.c.h.b16 %v249
        %v626 = vunpack.c.l.b16 %v250
        %v627 = vunpack.c.l.b16 %v251
        %v628 = vunpack.c.h.b16 %v251
        %v629 = vunpack.c.l.b16 %v252
        %v630 = vunpack.c.h.b16 %v252
        %v631 = vunpack.c.l.b16 %v253
        %v632 = vunpack.c.h.b16 %v253
        %v633 = vunpack.c.l.b16 %v254
        %v634 = vunpack.c.l.b16 %v255
        %v635 = vunpack.c.h.b16 %v255
        %v636 = vunpack.c.l.b16 %v256
        %v637 = vunpack.c.h.b16 %v256
        %v638 = vunpack.c.l.b16 %v257
        %v639 = vunpack.c.h.b16 %v257
        %v640 = vunpack.c.l.b16 %v258
        %v641 = vunpack.c.l.b16 %v259
        %v642 = vunpack.c.h.b16 %v259
        %v643 = vunpack.c.l.b16 %v260
        %v644 = vunpack.c.h.b16 %v260
        %v645 = vunpack.c.l.b16 %v261
        %v646 = vunpack.c.h.b16 %v261
        %v647 = vunpack.c.l.b16 %v262
        %v648 = vunpack.c.l.b16 %v263
        %v649 = vunpack.c.h.b16 %v263
        %v650 = vunpack.c.l.b16 %v264
        %v651 = vunpack.c.h.b16 %v264
        %v652 = vunpack.c.l.b16 %v265
        %v653 = vunpack.c.h.b16 %v265
        %v654 = vunpack.c.l.b16 %v266
        %v655 = vunpack.c.l.b16 %v267
        %v656 = vunpack.c.h.b16 %v267
        %v657 = vunpack.c.l.b16 %v268
        %v658 = vunpack.c.h.b16 %v268
        %v659 = vunpack.c.l.b16 %v269
        %v660 = vunpack.c.h.b16 %v269
        %v661 = vunpack.c.l.b16 %v270
        %v662 = vunpack.c.l.b16 %v271
        %v663 = vunpack.c.h.b16 %v271
        %v664 = vunpack.c.l.b16 %v272
        %v665 = vunpack.c.h.b16 %v272
        %v666 = vunpack.c.l.b16 %v273
        %v667 = vunpack.c.h.b16 %v273
        %v668 = vunpack.c.l.b16 %v274
        %v669 = vunpack.c.l.b16 %v275
        %v670 = vunpack.c.h.b16 %v275
        %v671 = vunpack.c.l.b16 %v276
        %v672 = vunpack.c.h.b16 %v276
        %v673 = vunpack.c.l.b16 %v277
        %v674 = vunpack.c.h.b16 %v277
        %v675 = vunpack.c.l.b16 %v278
        %v676 = vunpack.c.l.b16 %v279
        %v677 = vunpack.c.h.b16 %v279
        %v678 = vunpack.c.l.b16 %v280
        %v679 = vunpack.c.h.b16 %v280
        %v680 = vunpack.c.l.b16 %v281
        %v681 = vunpack.c.h.b16 %v281
        %v682 = vunpack.c.l.b16 %v282
        %v683 = vunpack.c.l.b16 %v283
        %v684 = vunpack.c.h.b16 %v283
        %v685 = vunpack.c.l.b16 %v284
        %v686 = vunpack.c.h.b16 %v284
        %v687 = vunpack.c.l.b16 %v285
        %v688 = vunpack.c.h.b16 %v285
        %v689 = vunpack.c.l.b16 %v286
        %v690 = vunpack.c.l.b16 %v287
        %v691 = vunpack.c.h.b16 %v287
        %v692 = vunpack.c.l.b16 %v288
        %v693 = vunpack.c.h.b16 %v288
        %v694 = vunpack.c.l.b16 %v289
        %v695 = vunpack.c.h.b16 %v289
        %v696 = vunpack.c.l.b16 %v290
        %v697 = vunpack.c.l.b16 %v291
        %v698 = vunpack.c.h.b16 %v291
        %v699 = vunpack.c.l.b16 %v292
        %v700 = vunpack.c.h.b16 %v292
        %v701 = vunpack.c.l.b16 %v293
        %v702 = vunpack.c.h.b16 %v293
        %v703 = vunpack.c.l.b16 %v294
        %v704 = vunpack.c.l.b16 %v295
        %v705 = vunpack.c.h.b16 %v295
        %v706 = vunpack.c.l.b16 %v296
        %v707 = vunpack.c.h.b16 %v296
        %v708 = vunpack.c.l.b16 %v297
        %v709 = vunpack.c.h.b16 %v297
        %v710 = vunpack.c.l.b16 %v298
        %v711 = vunpack.c.l.b16 %v299
        %v712 = vunpack.c.h.b16 %v299
        %v713 = vunpack.c.l.b16 %v300
        %v714 = vunpack.c.h.b16 %v300
        %v715 = vunpack.c.l.b16 %v301
        %v716 = vunpack.c.h.b16 %v301
        %v717 = vunpack.c.l.b16 %v302
        %v718 = vunpack.c.l.b16 %v303
        %v719 = vunpack.c.h.b16 %v303
        %v720 = vunpack.c.l.b16 %v304
        %v721 = vunpack.c.h.b16 %v304
        %v722 = vunpack.c.l.b16 %v305
        %v723 = vunpack.c.h.b16 %v305
        %v724 = vunpack.c.l.b16 %v306
        %v725 = vunpack.c.l.b16 %v307
        %v726 = vunpack.c.h.b16 %v307
        %v727 = vunpack.c.l.b16 %v308
        %v728 = vunpack.c.h.b16 %v308
        %v729 = vunpack.c.l.b16 %v309
        %v730 = vunpack.c.h.b16 %v309
        %v731 = vunpack.c.l.b16 %v310
        %v732 = vunpack.c.l.b16 %v311
        %v733 = vunpack.c.h.b16 %v311
        %v734 = vunpack.c.l.b16 %v312
        %v735 = vunpack.c.h.b16 %v312
        %v736 = vunpack.c.l.b16 %v313
        %v737 = vunpack.c.h.b16 %v313
        %v738 = vunpack.c.l.b16 %v314
        %v739 = vunpack.c.l.b16 %v315
        %v740 = vunpack.c.h.b16 %v315
        %v741 = vunpack.c.l.b16 %v316
        %v742 = vunpack.c.h.b16 %v316
        %v743 = vunpack.c.l.b16 %v317
        %v744 = vunpack.c.h.b16 %v317
        %v745 = vunpack.c.l.b16 %v318
        %v746 = vunpack.c.l.b16 %v319
        %v747 = vunpack.c.h.b16 %v319
        %v748 = vunpack.c.l.b16 %v320
        %v749 = vunpack.c.h.b16 %v320
        %v750 = vunpack.c.l.b16 %v321
        %v751 = vunpack.c.h.b16 %v321
        %v752 = vunpack.c.l.b16 %v322
        %v753 = vunpack.c.l.b16 %v323
        %v754 = vunpack.c.h.b16 %v323
        %v755 = vunpack.c.l.b16 %v324
        %v756 = vunpack.c.h.b16 %v324
        %v757 = vunpack.c.l.b16 %v325
        %v758 = vunpack.c.h.b16 %v325
        %v759 = vunpack.c.l.b16 %v326
        %v760 = vunpack.c.l.b16 %v327
        %v761 = vunpack.c.h.b16 %v327
        %v762 = vunpack.c.l.b16 %v328
        %v763 = vunpack.c.h.b16 %v328
        %v764 = vunpack.c.l.b16 %v329
        %v765 = vunpack.c.h.b16 %v329
        %v766 = vunpack.c.l.b16 %v330
        %v767 = vunpack.c.l.b16 %v331
        %v768 = vunpack.c.h.b16 %v331
        %v769 = vunpack.c.l.b16 %v332
        %v770 = vunpack.c.h.b16 %v332
        %v771 = vunpack.c.l.b16 %v333
        %v772 = vunpack.c.h.b16 %v333
        %v773 = vunpack.c.l.b16 %v334
        %v774 = vunpack.c.l.b16 %v335
        %v775 = vunpack.c.h.b16 %v335
        %v776 = vunpack.c.l.b16 %v336
        %v777 = vunpack.c.h.b16 %v336
        %v778 = vunpack.c.l.b16 %v337
        %v779 = vunpack.c.h.b16 %v337
        %v780 = vunpack.c.l.b16 %v338
        %v781 = vunpack.c.l.b16 %v339
        %v782 = vunpack.c.h.b16 %v339
        %v783 = vunpack.c.l.b16 %v340
        %v784 = vunpack.c.h.b16 %v340
        %v785 = vunpack.c.l.b16 %v341
        %v786 = vunpack.c.h.b16 %v341
        %v787 = vunpack.c.l.b16 %v342
        %v788 = vunpack.c.l.b16 %v343
        %v789 = vunpack.c.h.b16 %v343
        %v790 = vunpack.c.l.b16 %v344
        %v791 = vunpack.c.h.b16 %v344
        %v792 = vunpack.c.l.b16 %v345
        %v793 = vunpack.c.h.b16 %v345
        %v794 = vunpack.c.l.b16 %v346
        %v795 = vunpack.c.l.b16 %v347
        %v796 = vunpack.c.h.b16 %v347
        %v797 = vunpack.c.l.b16 %v348
        %v798 = vunpack.c.h.b16 %v348
        %v799 = vunpack.c.l.b16 %v349
        %v800 = vunpack.c.h.b16 %v349
        %v801 = vunpack.c.l.b16 %v350
        %v802 = vunpack.c.l.b16 %v351
        %v803 = vunpack.c.h.b16 %v351
        %v804 = vunpack.c.l.b16 %v352
        %v805 = vunpack.c.h.b16 %v352
        %v806 = vunpack.c.l.b16 %v353
        %v807 = vunpack.c.h.b16 %v353
        %v808 = vunpack.c.l.b16 %v354
        %v809 = vunpack.c.l.b16 %v355
        %v810 = vunpack.c.h.b16 %v355
        %v811 = vunpack.c.l.b16 %v356
        %v812 = vunpack.c.h.b16 %v356
        %v813 = vunpack.c.l.b16 %v357
        %v814 = vunpack.c.h.b16 %v357
        %v815 = vunpack.c.l.b16 %v358
        %v816 = vpack.c.b16 %v599, %v592
        %v817 = vpack.c.b16 %v600, %v593
        %v818 = vpack.c.b16 %v601, %v594
        %v819 = vpack.c.b16 %v602, %v595
        %v820 = vpack.c.b16 %v603, %v596
        %v821 = vpack.c.b16 %v604, %v597
        %v822 = vpack.c.b16 %v605, %v598
        %v823 = vpack.c.b16 %v613, %v606
        %v824 = vpack.c.b16 %v614, %v607
        %v825 = vpack.c.b16 %v615, %v608
        %v826 = vpack.c.b16 %v616, %v609
        %v827 = vpack.c.b16 %v617, %v610
        %v828 = vpack.c.b16 %v618, %v611
        %v829 = vpack.c.b16 %v619, %v612
        %v830 = vpack.c.b16 %v627, %v620
        %v831 = vpack.c.b16 %v628, %v621
        %v832 = vpack.c.b16 %v629, %v622
        %v833 = vpack.c.b16 %v630, %v623
        %v834 = vpack.c.b16 %v631, %v624
        %v835 = vpack.c.b16 %v632, %v625
        %v836 = vpack.c.b16 %v633, %v626
        %v837 = vpack.c.b16 %v641, %v634
        %v838 = vpack.c.b16 %v642, %v635
        %v839 = vpack.c.b16 %v643, %v636
        %v840 = vpack.c.b16 %v644, %v637
        %v841 = vpack.c.b16 %v645, %v638
        %v842 = vpack.c.b16 %v646, %v639
        %v843 = vpack.c.b16 %v647, %v640
        %v844 = vpack.c.b16 %v655, %v648
        %v845 = vpack.c.b16 %v656, %v649
        %v846 = vpack.c.b16 %v657, %v650
        %v847 = vpack.c.b16 %v658, %v651
        %v848 = vpack.c.b16 %v659, %v652
        %v849 = vpack.c.b16 %v660, %v653
        %v850 = vpack.c.b16 %v661, %v654
        %v851 = vpack.c.b16 %v669, %v662
        %v852 = vpack.c.b16 %v670, %v663
        %v853 = vpack.c.b16 %v671, %v664
        %v854 = vpack.c.b16 %v672, %v665
        %v855 = vpack.c.b16 %v673, %v666
        %v856 = vpack.c.b16 %v674, %v667
        %v857 = vpack.c.b16 %v675, %v668
        %v858 = vpack.c.b16 %v683, %v676
        %v859 = vpack.c.b16 %v684, %v677
        %v860 = vpack.c.b16 %v685, %v678
        %v861 = vpack.c.b16 %v686, %v679
        %v862 = vpack.c.b16 %v687, %v680
        %v863 = vpack.c.b16 %v688, %v681
        %v864 = vpack.c.b16 %v689, %v682
        %v865 = vpack.c.b16 %v697, %v690
        %v866 = vpack.c.b16 %v698, %v691
        %v867 = vpack.c.b16 %v699, %v692
        %v868 = vpack.c.b16 %v700, %v693
        %v869 = vpack.c.b16 %v701, %v694
        %v870 = vpack.c.b16 %v702, %v695
        %v871 = vpack.c.b16 %v703, %v696
        %v872 = vpack.c.b16 %v711, %v704
        %v873 = vpack.c.b16 %v712, %v705
        %v874 = vpack.c.b16 %v713, %v706
        %v875 = vpack.c.b16 %v714, %v707
        %v876 = vpack.c.b16 %v715, %v708
        %v877 = vpack.c.b16 %v716, %v709
        %v878 = vpack.c.b16 %v717, %v710
        %v879 = vpack.c.b16 %v725, %v718
        %v880 = vpack.c.b16 %v726, %v719
        %v881 = vpack.c.b16 %v727, %v720
        %v882 = vpack.c.b16 %v728, %v721
        %v883 = vpack.c.b16 %v729, %v722
        %v884 = vpack.c.b16 %v730, %v723
        %v885 = vpack.c.b16 %v731, %v724
        %v886 = vpack.c.b16 %v739, %v732
        %v887 = vpack.c.b16 %v740, %v733
        %v888 = vpack.c.b16 %v741, %v734
        %v889 = vpack.c.b16 %v742, %v735
        %v890 = vpack.c.b16 %v743, %v736
        %v891 = vpack.c.b16 %v744, %v737
        %v892 = vpack.c.b16 %v745, %v738
        %v893 = vpack.c.b16 %v753, %v746
        %v894 = vpack.c.b16 %v754, %v747
        %v895 = vpack.c.b16 %v755, %v748
        %v896 = vpack.c.b16 %v756, %v749
        %v897 = vpack.c.b16 %v757, %v750
        %v898 = vpack.c.b16 %v758, %v751
        %v899 = vpack.c.b16 %v759, %v752
        %v900 = vpack.c.b16 %v767, %v760
        %v901 = vpack.c.b16 %v768, %v761
        %v902 = vpack.c.b16 %v769, %v762
        %v903 = vpack.c.b16 %v770, %v763
        %v904 = vpack.c.b16 %v771, %v764
        %v905 = vpack.c.b16 %v772, %v765
        %v906 = vpack.c.b16 %v773, %v766
        %v907 = vpack.c.b16 %v781, %v774
        %v908 = vpack.c.b16 %v782, %v775
        %v909 = vpack.c.b16 %v783, %v776
        %v910 = vpack.c.b16 %v784, %v777
        %v911 = vpack.c.b16 %v785, %v778
        %v912 = vpack.c.b16 %v786, %v779
        %v913 = vpack.c.b16 %v787, %v780
        %v914 = vpack.c.b16 %v795, %v788
        %v915 = vpack.c.b16 %v796, %v789
        %v916 = vpack.c.b16 %v797, %v790
        %v917 = vpack.c.b16 %v798, %v791
        %v918 = vpack.c.b16 %v799, %v792
        %v919 = vpack.c.b16 %v800, %v793
        %v920 = vpack.c.b16 %v801, %v794
        %v921 = vpack.c.b16 %v809, %v802
        %v922 = vpack.c.b16 %v810, %v803
        %v923 = vpack.c.b16 %v811, %v804
        %v924 = vpack.c.b16 %v812, %v805
        %v925 = vpack.c.b16 %v813, %v806
        %v926 = vpack.c.b16 %v814, %v807
        %v927 = vpack.c.b16 %v815, %v808
        %v1122 = vunpack.c.l.b16 %v359
        %v1123 = vunpack.c.l.b16 %v360
        %v1124 = vunpack.c.l.b16 %v361
        %v1125 = vunpack.c.l.b16 %v362
        %v1126 = vunpack.c.l.b16 %v363
        %v1127 = vunpack.c.l.b16 %v364
        %v1128 = vunpack.c.l.b16 %v365
        %v1129 = vunpack.c.l.b16 %v366
        %v1130 = vunpack.c.l.b16 %v367
        %v1131 = vunpack.c.l.b16 %v368
        %v1132 = vunpack.c.l.b16 %v369
        %v1133 = vunpack.c.l.b16 %v370
        %v1134 = vunpack.c.l.b16 %v371
        %v1135 = vunpack.c.l.b16 %v372
        %v1136 = vunpack.c.l.b16 %v373
        %v1137 = vunpack.c.l.b16 %v374
        %v1138 = vunpack.c.l.b16 %v375
        %v1139 = vunpack.c.l.b16 %v376
        %v1140 = vunpack.c.l.b16 %v377
        %v1141 = vunpack.c.l.b16 %v378
        %v1142 = vunpack.c.l.b16 %v379
        %v1143 = vunpack.c.l.b16 %v380
        %v1144 = vunpack.c.l.b16 %v381
        %v1145 = vunpack.c.l.b16 %v382
        %v1146 = vunpack.c.l.b16 %v383
        %v1147 = vunpack.c.l.b16 %v384
        %v1148 = vunpack.c.l.b16 %v385
        %v1149 = vunpack.c.l.b16 %v386
        %v1150 = vunpack.c.l.b16 %v387
        %v1151 = vunpack.c.l.b16 %v388
        %v1152 = vunpack.c.l.b16 %v389
        %v1153 = vunpack.c.l.b16 %v390
        %v1154 = vunpack.c.l.b16 %v391
        %v1155 = vunpack.c.l.b16 %v392
        %v1156 = vunpack.c.l.b16 %v393
        %v1157 = vunpack.c.l.b16 %v394
        %v1158 = vunpack.c.l.b16 %v395
        %v1159 = vunpack.c.l.b16 %v396
        %v1160 = vunpack.c.l.b16 %v397
        %v1161 = vunpack.c.l.b16 %v398
        %v1162 = vunpack.c.l.b16 %v399
        %v1163 = vunpack.c.l.b16 %v400
        %v1164 = vunpack.c.l.b16 %v401
        %v1165 = vunpack.c.l.b16 %v402
        %v1166 = vunpack.c.l.b16 %v403
        %v1167 = vunpack.c.l.b16 %v404
        %v1168 = vunpack.c.l.b16 %v405
        %v1169 = vunpack.c.l.b16 %v406
        %v1170 = vunpack.c.l.b16 %v407
        %v1171 = vunpack.c.l.b16 %v408
        %v1172 = vunpack.c.l.b16 %v409
        %v1173 = vunpack.c.l.b16 %v410
        %v1174 = vunpack.c.l.b16 %v411
        %v1175 = vunpack.c.l.b16 %v412
        %v1176 = vunpack.c.l.b16 %v413
        %v1177 = vunpack.c.l.b16 %v414
        %v1178 = vunpack.c.l.b16 %v415
        %v1179 = vunpack.c.l.b16 %v416
        %v1180 = vunpack.c.l.b16 %v417
        %v1181 = vunpack.c.l.b16 %v418
        %v1182 = vunpack.c.l.b16 %v419
        %v1183 = vunpack.c.l.b16 %v420
        %v1184 = vunpack.c.l.b16 %v421
        %v1185 = vunpack.c.l.b16 %v422
        %v1186 = vunpack.c.l.b16 %v423
        %v1187 = vunpack.c.l.b16 %v424
        %v1188 = vunpack.c.l.b16 %v425
        %v1189 = vunpack.c.l.b16 %v426
        %v1190 = vunpack.c.l.b16 %v427
        %v1191 = vunpack.c.l.b16 %v428
        %v1192 = vunpack.c.l.b16 %v429
        %v1193 = vunpack.c.l.b16 %v430
        %v1194 = vunpack.c.l.b16 %v431
        %v1195 = vunpack.c.l.b16 %v432
        %v1196 = vunpack.c.l.b16 %v433
        %v1197 = vunpack.c.l.b16 %v434
        %v1198 = vunpack.c.l.b16 %v435
        %v1199 = vunpack.c.l.b16 %v436
        %v1200 = vunpack.c.l.b16 %v437
        %v1201 = vunpack.c.l.b16 %v438
        %v1202 = vunpack.c.l.b16 %v439
        %v1203 = vunpack.c.l.b16 %v440
        %v1204 = vunpack.c.l.b16 %v441
        %v1205 = vunpack.c.l.b16 %v442
        %v1206 = vunpack.c.l.b16 %v443
        %v1207 = vunpack.c.l.b16 %v444
        %v1208 = vunpack.c.l.b16 %v445
        %v1209 = vunpack.c.l.b16 %v446
        %v1210 = vunpack.c.l.b16 %v447
        %v1211 = vunpack.c.l.b16 %v448
        %v1212 = vunpack.c.l.b16 %v449
        %v1213 = vunpack.c.l.b16 %v450
        %v1214 = vunpack.c.l.b16 %v451
        %v1215 = vunpack.c.l.b16 %v452
        %v1216 = vunpack.c.l.b16 %v453
        %v1217 = vunpack.c.l.b16 %v454
        %v1218 = vunpack.c.l.b16 %v455
        %v1219 = vunpack.c.l.b16 %v456
        %v1220 = vpack.c.b16 %v1123, %v1122
        %v1221 = vpack.c.b16 %v1125, %v1124
        %v1222 = vpack.c.b16 %v1127, %v1126
        %v1223 = vpack.c.b16 %v1129, %v1128
        %v1224 = vpack.c.b16 %v1131, %v1130
        %v1225 = vpack.c.b16 %v1133, %v1132
        %v1226 = vpack.c.b16 %v1135, %v1134
        %v1227 = vpack.c.b16 %v1137, %v1136
        %v1228 = vpack.c.b16 %v1139, %v1138
        %v1229 = vpack.c.b16 %v1141, %v1140
        %v1230 = vpack.c.b16 %v1143, %v1142
        %v1231 = vpack.c.b16 %v1145, %v1144
        %v1232 = vpack.c.b16 %v1147, %v1146
        %v1233 = vpack.c.b16 %v1149, %v1148
        %v1234 = vpack.c.b16 %v1151, %v1150
        %v1235 = vpack.c.b16 %v1153, %v1152
        %v1236 = vpack.c.b16 %v1155, %v1154
        %v1237 = vpack.c.b16 %v1157, %v1156
        %v1238 = vpack.c.b16 %v1159, %v1158
        %v1239 = vpack.c.b16 %v1161, %v1160
        %v1240 = vpack.c.b16 %v1163, %v1162
        %v1241 = vpack.c.b16 %v1165, %v1164
        %v1242 = vpack.c.b16 %v1167, %v1166
        %v1243 = vpack.c.b16 %v1169, %v1168
        %v1244 = vpack.c.b16 %v1171, %v1170
        %v1245 = vpack.c.b16 %v1173, %v1172
        %v1246 = vpack.c.b16 %v1175, %v1174
        %v1247 = vpack.c.b16 %v1177, %v1176
        %v1248 = vpack.c.b16 %v1179, %v1178
        %v1249 = vpack.c.b16 %v1181, %v1180
        %v1250 = vpack.c.b16 %v1183, %v1182
        %v1251 = vpack.c.b16 %v1185, %v1184
        %v1252 = vpack.c.b16 %v1187, %v1186
        %v1253 = vpack.c.b16 %v1189, %v1188
        %v1254 = vpack.c.b16 %v1191, %v1190
        %v1255 = vpack.c.b16 %v1193, %v1192
        %v1256 = vpack.c.b16 %v1195, %v1194
        %v1257 = vpack.c.b16 %v1197, %v1196
        %v1258 = vpack.c.b16 %v1199, %v1198
        %v1259 = vpack.c.b16 %v1201, %v1200
        %v1260 = vpack.c.b16 %v1203, %v1202
        %v1261 = vpack.c.b16 %v1205, %v1204
        %v1262 = vpack.c.b16 %v1207, %v1206
        %v1263 = vpack.c.b16 %v1209, %v1208
        %v1264 = vpack.c.b16 %v1211, %v1210
        %v1265 = vpack.c.b16 %v1213, %v1212
        %v1266 = vpack.c.b16 %v1215, %v1214
        %v1267 = vpack.c.b16 %v1217, %v1216
        %v1268 = vpack.c.b16 %v1219, %v1218
        %vm1318 = vcmask 130048
        %v1320 = vsel %vm1318, %v822, 0
        %v1323 = vsel %vm1318, %v829, 0
        %v1326 = vsel %vm1318, %v836, 0
        %v1329 = vsel %vm1318, %v843, 0
        %v1332 = vsel %vm1318, %v850, 0
        %v1335 = vsel %vm1318, %v857, 0
        %v1338 = vsel %vm1318, %v864, 0
        %v1341 = vsel %vm1318, %v871, 0
        %v1344 = vsel %vm1318, %v878, 0
        %v1347 = vsel %vm1318, %v885, 0
        %v1350 = vsel %vm1318, %v892, 0
        %v1353 = vsel %vm1318, %v899, 0
        %v1356 = vsel %vm1318, %v906, 0
        %v1359 = vsel %vm1318, %v913, 0
        %v1362 = vsel %vm1318, %v920, 0
        %v1365 = vsel %vm1318, %v927, 0
        %1367 = vmatprep.subr.bf16.mxu0 0
        %1368 = vmatpush1.bf16.msra.mxu0 %v1220
        %1369 = vmatprep.subr.bf16.mxu0 0
        %1370 = vmatpush1.bf16.msra.mxu0 %v1221
        %1371 = vmatprep.subr.bf16.mxu0 0
        %1372 = vmatpush1.bf16.msra.mxu0 %v1222
        %1373 = vmatprep.subr.bf16.mxu0 0
        %1374 = vmatpush1.bf16.msra.mxu0 %v1223
        %1375 = vmatprep.subr.bf16.mxu0 0
        %1376 = vmatpush1.bf16.msra.mxu0 %v1224
        %1377 = vmatprep.subr.bf16.mxu0 0
        %1378 = vmatpush1.bf16.msra.mxu0 %v1225
        %1379 = vmatprep.subr.bf16.mxu0 0
        %1380 = vmatpush1.bf16.msra.mxu0 %v1226
        %1381 = vmatprep.subr.bf16.mxu0 0
        %1382 = vmatpush1.bf16.msra.mxu0 %v1227
        %1383 = vmatprep.subr.bf16.mxu0 0
        %1384 = vmatpush1.bf16.msra.mxu0 %v1228
        %1385 = vmatprep.subr.bf16.mxu0 0
        %1386 = vmatpush1.bf16.msra.mxu0 %v1229
        %1387 = vmatprep.subr.bf16.mxu0 0
        %1388 = vmatpush1.bf16.msra.mxu0 %v1230
        %1389 = vmatprep.subr.bf16.mxu0 0
        %1390 = vmatpush1.bf16.msra.mxu0 %v1231
        %1391 = vmatprep.subr.bf16.mxu0 0
        %1392 = vmatpush1.bf16.msra.mxu0 %v1232
        %1393 = vmatprep.subr.bf16.mxu0 0
        %1394 = vmatpush1.bf16.msra.mxu0 %v1233
        %1395 = vmatprep.subr.bf16.mxu0 0
        %1396 = vmatpush1.bf16.msra.mxu0 %v1234
        %1397 = vmatprep.subr.bf16.mxu0 0
        %1398 = vmatpush1.bf16.msra.mxu0 %v1235
        %1399 = vmatprep.mubr.bf16.mxu0 %v817
        %1400 = vmatmul.mubr.bf16.gmra.mrb[0].mxu0 %v816
        %v1401 = vpop.f32.mrb[0].mxu0
        %v1402 = vadd.f32 %v462, %v1401
        %v1403 = vpop.f32.mrb[0].mxu0
        %v1404 = vpop.f32.mrb[0].mxu0
        %v1405 = vadd.f32 %v462, %v1404
        %v1406 = vpop.f32.mrb[0].mxu0
        %1407 = vmatprep.mubr.bf16.mxu0 %v824
        %1408 = vmatmul.mubr.bf16.gmra.mrb[0].mxu0 %v823
        %v1409 = vpop.f32.mrb[0].mxu0
        %v1410 = vadd.f32 %v462, %v1409
        %v1411 = vpop.f32.mrb[0].mxu0
        %v1412 = vpop.f32.mrb[0].mxu0
        %v1413 = vadd.f32 %v462, %v1412
        %v1414 = vpop.f32.mrb[0].mxu0
        %1415 = vmatprep.mubr.bf16.mxu0 %v831
        %1416 = vmatmul.mubr.bf16.gmra.mrb[0].mxu0 %v830
        %v1417 = vpop.f32.mrb[0].mxu0
        %v1418 = vadd.f32 %v462, %v1417
        %v1419 = vpop.f32.mrb[0].mxu0
        %v1420 = vpop.f32.mrb[0].mxu0
        %v1421 = vadd.f32 %v462, %v1420
        %v1422 = vpop.f32.mrb[0].mxu0
        %1423 = vmatprep.mubr.bf16.mxu0 %v838
        %1424 = vmatmul.mubr.bf16.gmra.mrb[0].mxu0 %v837
        %v1425 = vpop.f32.mrb[0].mxu0
        %v1426 = vadd.f32 %v462, %v1425
        %v1427 = vpop.f32.mrb[0].mxu0
        %v1428 = vpop.f32.mrb[0].mxu0
        %v1429 = vadd.f32 %v462, %v1428
        %v1430 = vpop.f32.mrb[0].mxu0
        %1431 = vmatprep.mubr.bf16.mxu0 %v845
        %1432 = vmatmul.mubr.bf16.gmra.mrb[0].mxu0 %v844
        %v1433 = vpop.f32.mrb[0].mxu0
        %v1434 = vadd.f32 %v462, %v1433
        %v1435 = vpop.f32.mrb[0].mxu0
        %v1436 = vpop.f32.mrb[0].mxu0
        %v1437 = vadd.f32 %v462, %v1436
        %v1438 = vpop.f32.mrb[0].mxu0
        %1439 = vmatprep.mubr.bf16.mxu0 %v852
        %1440 = vmatmul.mubr.bf16.gmra.mrb[0].mxu0 %v851
        %v1441 = vpop.f32.mrb[0].mxu0
        %v1442 = vadd.f32 %v462, %v1441
        %v1443 = vpop.f32.mrb[0].mxu0
        %v1444 = vpop.f32.mrb[0].mxu0
        %v1445 = vadd.f32 %v462, %v1444
        %v1446 = vpop.f32.mrb[0].mxu0
        %1447 = vmatprep.mubr.bf16.mxu0 %v859
        %1448 = vmatmul.mubr.bf16.gmra.mrb[0].mxu0 %v858
        %v1449 = vpop.f32.mrb[0].mxu0
        %v1450 = vadd.f32 %v462, %v1449
        %v1451 = vpop.f32.mrb[0].mxu0
        %v1452 = vpop.f32.mrb[0].mxu0
        %v1453 = vadd.f32 %v462, %v1452
        %v1454 = vpop.f32.mrb[0].mxu0
        %1455 = vmatprep.mubr.bf16.mxu0 %v866
        %1456 = vmatmul.mubr.bf16.gmra.mrb[0].mxu0 %v865
        %v1457 = vpop.f32.mrb[0].mxu0
        %v1458 = vadd.f32 %v462, %v1457
        %v1459 = vpop.f32.mrb[0].mxu0
        %v1460 = vpop.f32.mrb[0].mxu0
        %v1461 = vadd.f32 %v462, %v1460
        %v1462 = vpop.f32.mrb[0].mxu0
        %1463 = vmatprep.mubr.bf16.mxu0 %v873
        %1464 = vmatmul.mubr.bf16.gmra.mrb[0].mxu0 %v872
        %v1465 = vpop.f32.mrb[0].mxu0
        %v1466 = vadd.f32 %v462, %v1465
        %v1467 = vpop.f32.mrb[0].mxu0
        %v1468 = vpop.f32.mrb[0].mxu0
        %v1469 = vadd.f32 %v462, %v1468
        %v1470 = vpop.f32.mrb[0].mxu0
        %1471 = vmatprep.mubr.bf16.mxu0 %v880
        %1472 = vmatmul.mubr.bf16.gmra.mrb[0].mxu0 %v879
        %v1473 = vpop.f32.mrb[0].mxu0
        %v1474 = vadd.f32 %v462, %v1473
        %v1475 = vpop.f32.mrb[0].mxu0
        %v1476 = vpop.f32.mrb[0].mxu0
        %v1477 = vadd.f32 %v462, %v1476
        %v1478 = vpop.f32.mrb[0].mxu0
        %1479 = vmatprep.mubr.bf16.mxu0 %v887
        %1480 = vmatmul.mubr.bf16.gmra.mrb[0].mxu0 %v886
        %v1481 = vpop.f32.mrb[0].mxu0
        %v1482 = vadd.f32 %v462, %v1481
        %v1483 = vpop.f32.mrb[0].mxu0
        %v1484 = vpop.f32.mrb[0].mxu0
        %v1485 = vadd.f32 %v462, %v1484
        %v1486 = vpop.f32.mrb[0].mxu0
        %1487 = vmatprep.mubr.bf16.mxu0 %v894
        %1488 = vmatmul.mubr.bf16.gmra.mrb[0].mxu0 %v893
        %v1489 = vpop.f32.mrb[0].mxu0
        %v1490 = vadd.f32 %v462, %v1489
        %v1491 = vpop.f32.mrb[0].mxu0
        %v1492 = vpop.f32.mrb[0].mxu0
        %v1493 = vadd.f32 %v462, %v1492
        %v1494 = vpop.f32.mrb[0].mxu0
        %1495 = vmatprep.mubr.bf16.mxu0 %v901
        %1496 = vmatmul.mubr.bf16.gmra.mrb[0].mxu0 %v900
        %v1497 = vpop.f32.mrb[0].mxu0
        %v1498 = vadd.f32 %v462, %v1497
        %v1499 = vpop.f32.mrb[0].mxu0
        %v1500 = vpop.f32.mrb[0].mxu0
        %v1501 = vadd.f32 %v462, %v1500
        %v1502 = vpop.f32.mrb[0].mxu0
        %1503 = vmatprep.mubr.bf16.mxu0 %v908
        %1504 = vmatmul.mubr.bf16.gmra.mrb[0].mxu0 %v907
        %v1505 = vpop.f32.mrb[0].mxu0
        %v1506 = vadd.f32 %v462, %v1505
        %v1507 = vpop.f32.mrb[0].mxu0
        %v1508 = vpop.f32.mrb[0].mxu0
        %v1509 = vadd.f32 %v462, %v1508
        %v1510 = vpop.f32.mrb[0].mxu0
        %1511 = vmatprep.mubr.bf16.mxu0 %v915
        %1512 = vmatmul.mubr.bf16.gmra.mrb[0].mxu0 %v914
        %v1513 = vpop.f32.mrb[0].mxu0
        %v1514 = vadd.f32 %v462, %v1513
        %v1515 = vpop.f32.mrb[0].mxu0
        %v1516 = vpop.f32.mrb[0].mxu0
        %v1517 = vadd.f32 %v462, %v1516
        %v1518 = vpop.f32.mrb[0].mxu0
        %1519 = vmatprep.mubr.bf16.mxu0 %v922
        %1520 = vmatmul.mubr.bf16.gmra.mrb[0].mxu0 %v921
        %v1521 = vpop.f32.mrb[0].mxu0
        %v1522 = vadd.f32 %v462, %v1521
        %v1523 = vpop.f32.mrb[0].mxu0
        %v1524 = vpop.f32.mrb[0].mxu0
        %v1525 = vadd.f32 %v462, %v1524
        %v1526 = vpop.f32.mrb[0].mxu0
        %1527 = vdwg.mxu0
        %1528 = vmatprep.subr.bf16.mxu0 0
        %1529 = vmatpush1.bf16.msra.mxu0 %v1236
        %1530 = vmatprep.subr.bf16.mxu0 0
        %1531 = vmatpush1.bf16.msra.mxu0 %v1237
        %1532 = vmatprep.subr.bf16.mxu0 0
        %1533 = vmatpush1.bf16.msra.mxu0 %v1238
        %1534 = vmatprep.subr.bf16.mxu0 0
        %1535 = vmatpush1.bf16.msra.mxu0 %v1239
        %1536 = vmatprep.subr.bf16.mxu0 0
        %1537 = vmatpush1.bf16.msra.mxu0 %v1240
        %1538 = vmatprep.subr.bf16.mxu0 0
        %1539 = vmatpush1.bf16.msra.mxu0 %v1241
        %1540 = vmatprep.subr.bf16.mxu0 0
        %1541 = vmatpush1.bf16.msra.mxu0 %v1242
        %1542 = vmatprep.subr.bf16.mxu0 0
        %1543 = vmatpush1.bf16.msra.mxu0 %v1243
        %1544 = vmatprep.subr.bf16.mxu0 0
        %1545 = vmatpush1.bf16.msra.mxu0 %v1244
        %1546 = vmatprep.subr.bf16.mxu0 0
        %1547 = vmatpush1.bf16.msra.mxu0 %v1245
        %1548 = vmatprep.subr.bf16.mxu0 0
        %1549 = vmatpush1.bf16.msra.mxu0 %v1246
        %1550 = vmatprep.subr.bf16.mxu0 0
        %1551 = vmatpush1.bf16.msra.mxu0 %v1247
        %1552 = vmatprep.subr.bf16.mxu0 0
        %1553 = vmatpush1.bf16.msra.mxu0 %v1248
        %1554 = vmatprep.subr.bf16.mxu0 0
        %1555 = vmatpush1.bf16.msra.mxu0 %v1249
        %1556 = vmatprep.subr.bf16.mxu0 0
        %1557 = vmatpush1.bf16.msra.mxu0 %v1250
        %1558 = vmatprep.subr.bf16.mxu0 0
        %1559 = vmatpush1.bf16.msra.mxu0 %v1251
        %1560 = vmatprep.mubr.bf16.mxu0 %v819
        %1561 = vmatmul.mubr.bf16.gmra.mrb[0].mxu0 %v818
        %v1562 = vpop.f32.mrb[0].mxu0
        %v1563 = vadd.f32 %v1402, %v1562
        %v1564 = vpop.f32.mrb[0].mxu0
        %v1565 = vpop.f32.mrb[0].mxu0
        %v1566 = vadd.f32 %v1405, %v1565
        %v1567 = vpop.f32.mrb[0].mxu0
        %1568 = vmatprep.mubr.bf16.mxu0 %v826
        %1569 = vmatmul.mubr.bf16.gmra.mrb[0].mxu0 %v825
        %v1570 = vpop.f32.mrb[0].mxu0
        %v1571 = vadd.f32 %v1410, %v1570
        %v1572 = vpop.f32.mrb[0].mxu0
        %v1573 = vpop.f32.mrb[0].mxu0
        %v1574 = vadd.f32 %v1413, %v1573
        %v1575 = vpop.f32.mrb[0].mxu0
        %1576 = vmatprep.mubr.bf16.mxu0 %v833
        %1577 = vmatmul.mubr.bf16.gmra.mrb[0].mxu0 %v832
        %v1578 = vpop.f32.mrb[0].mxu0
        %v1579 = vadd.f32 %v1418, %v1578
        %v1580 = vpop.f32.mrb[0].mxu0
        %v1581 = vpop.f32.mrb[0].mxu0
        %v1582 = vadd.f32 %v1421, %v1581
        %v1583 = vpop.f32.mrb[0].mxu0
        %1584 = vmatprep.mubr.bf16.mxu0 %v840
        %1585 = vmatmul.mubr.bf16.gmra.mrb[0].mxu0 %v839
        %v1586 = vpop.f32.mrb[0].mxu0
        %v1587 = vadd.f32 %v1426, %v1586
        %v1588 = vpop.f32.mrb[0].mxu0
        %v1589 = vpop.f32.mrb[0].mxu0
        %v1590 = vadd.f32 %v1429, %v1589
        %v1591 = vpop.f32.mrb[0].mxu0
        %1592 = vmatprep.mubr.bf16.mxu0 %v847
        %1593 = vmatmul.mubr.bf16.gmra.mrb[0].mxu0 %v846
        %v1594 = vpop.f32.mrb[0].mxu0
        %v1595 = vadd.f32 %v1434, %v1594
        %v1596 = vpop.f32.mrb[0].mxu0
        %v1597 = vpop.f32.mrb[0].mxu0
        %v1598 = vadd.f32 %v1437, %v1597
        %v1599 = vpop.f32.mrb[0].mxu0
        %1600 = vmatprep.mubr.bf16.mxu0 %v854
        %1601 = vmatmul.mubr.bf16.gmra.mrb[0].mxu0 %v853
        %v1602 = vpop.f32.mrb[0].mxu0
        %v1603 = vadd.f32 %v1442, %v1602
        %v1604 = vpop.f32.mrb[0].mxu0
        %v1605 = vpop.f32.mrb[0].mxu0
        %v1606 = vadd.f32 %v1445, %v1605
        %v1607 = vpop.f32.mrb[0].mxu0
        %1608 = vmatprep.mubr.bf16.mxu0 %v861
        %1609 = vmatmul.mubr.bf16.gmra.mrb[0].mxu0 %v860
        %v1610 = vpop.f32.mrb[0].mxu0
        %v1611 = vadd.f32 %v1450, %v1610
        %v1612 = vpop.f32.mrb[0].mxu0
        %v1613 = vpop.f32.mrb[0].mxu0
        %v1614 = vadd.f32 %v1453, %v1613
        %v1615 = vpop.f32.mrb[0].mxu0
        %1616 = vmatprep.mubr.bf16.mxu0 %v868
        %1617 = vmatmul.mubr.bf16.gmra.mrb[0].mxu0 %v867
        %v1618 = vpop.f32.mrb[0].mxu0
        %v1619 = vadd.f32 %v1458, %v1618
        %v1620 = vpop.f32.mrb[0].mxu0
        %v1621 = vpop.f32.mrb[0].mxu0
        %v1622 = vadd.f32 %v1461, %v1621
        %v1623 = vpop.f32.mrb[0].mxu0
        %1624 = vmatprep.mubr.bf16.mxu0 %v875
        %1625 = vmatmul.mubr.bf16.gmra.mrb[0].mxu0 %v874
        %v1626 = vpop.f32.mrb[0].mxu0
        %v1627 = vadd.f32 %v1466, %v1626
        %v1628 = vpop.f32.mrb[0].mxu0
        %v1629 = vpop.f32.mrb[0].mxu0
        %v1630 = vadd.f32 %v1469, %v1629
        %v1631 = vpop.f32.mrb[0].mxu0
        %1632 = vmatprep.mubr.bf16.mxu0 %v882
        %1633 = vmatmul.mubr.bf16.gmra.mrb[0].mxu0 %v881
        %v1634 = vpop.f32.mrb[0].mxu0
        %v1635 = vadd.f32 %v1474, %v1634
        %v1636 = vpop.f32.mrb[0].mxu0
        %v1637 = vpop.f32.mrb[0].mxu0
        %v1638 = vadd.f32 %v1477, %v1637
        %v1639 = vpop.f32.mrb[0].mxu0
        %1640 = vmatprep.mubr.bf16.mxu0 %v889
        %1641 = vmatmul.mubr.bf16.gmra.mrb[0].mxu0 %v888
        %v1642 = vpop.f32.mrb[0].mxu0
        %v1643 = vadd.f32 %v1482, %v1642
        %v1644 = vpop.f32.mrb[0].mxu0
        %v1645 = vpop.f32.mrb[0].mxu0
        %v1646 = vadd.f32 %v1485, %v1645
        %v1647 = vpop.f32.mrb[0].mxu0
        %1648 = vmatprep.mubr.bf16.mxu0 %v896
        %1649 = vmatmul.mubr.bf16.gmra.mrb[0].mxu0 %v895
        %v1650 = vpop.f32.mrb[0].mxu0
        %v1651 = vadd.f32 %v1490, %v1650
        %v1652 = vpop.f32.mrb[0].mxu0
        %v1653 = vpop.f32.mrb[0].mxu0
        %v1654 = vadd.f32 %v1493, %v1653
        %v1655 = vpop.f32.mrb[0].mxu0
        %1656 = vmatprep.mubr.bf16.mxu0 %v903
        %1657 = vmatmul.mubr.bf16.gmra.mrb[0].mxu0 %v902
        %v1658 = vpop.f32.mrb[0].mxu0
        %v1659 = vadd.f32 %v1498, %v1658
        %v1660 = vpop.f32.mrb[0].mxu0
        %v1661 = vpop.f32.mrb[0].mxu0
        %v1662 = vadd.f32 %v1501, %v1661
        %v1663 = vpop.f32.mrb[0].mxu0
        %1664 = vmatprep.mubr.bf16.mxu0 %v910
        %1665 = vmatmul.mubr.bf16.gmra.mrb[0].mxu0 %v909
        %v1666 = vpop.f32.mrb[0].mxu0
        %v1667 = vadd.f32 %v1506, %v1666
        %v1668 = vpop.f32.mrb[0].mxu0
        %v1669 = vpop.f32.mrb[0].mxu0
        %v1670 = vadd.f32 %v1509, %v1669
        %v1671 = vpop.f32.mrb[0].mxu0
        %1672 = vmatprep.mubr.bf16.mxu0 %v917
        %1673 = vmatmul.mubr.bf16.gmra.mrb[0].mxu0 %v916
        %v1674 = vpop.f32.mrb[0].mxu0
        %v1675 = vadd.f32 %v1514, %v1674
        %v1676 = vpop.f32.mrb[0].mxu0
        %v1677 = vpop.f32.mrb[0].mxu0
        %v1678 = vadd.f32 %v1517, %v1677
        %v1679 = vpop.f32.mrb[0].mxu0
        %1680 = vmatprep.mubr.bf16.mxu0 %v924
        %1681 = vmatmul.mubr.bf16.gmra.mrb[0].mxu0 %v923
        %v1682 = vpop.f32.mrb[0].mxu0
        %v1683 = vadd.f32 %v1522, %v1682
        %v1684 = vpop.f32.mrb[0].mxu0
        %v1685 = vpop.f32.mrb[0].mxu0
        %v1686 = vadd.f32 %v1525, %v1685
        %v1687 = vpop.f32.mrb[0].mxu0
        %1688 = vdwg.mxu0
        %1689 = vmatprep.subr.bf16.mxu0 0
        %1690 = vmatpush1.bf16.msra.mxu0 %v1252
        %1691 = vmatprep.subr.bf16.mxu0 0
        %1692 = vmatpush1.bf16.msra.mxu0 %v1253
        %1693 = vmatprep.subr.bf16.mxu0 0
        %1694 = vmatpush1.bf16.msra.mxu0 %v1254
        %1695 = vmatprep.subr.bf16.mxu0 0
        %1696 = vmatpush1.bf16.msra.mxu0 %v1255
        %1697 = vmatprep.subr.bf16.mxu0 0
        %1698 = vmatpush1.bf16.msra.mxu0 %v1256
        %1699 = vmatprep.subr.bf16.mxu0 0
        %1700 = vmatpush1.bf16.msra.mxu0 %v1257
        %1701 = vmatprep.subr.bf16.mxu0 0
        %1702 = vmatpush1.bf16.msra.mxu0 %v1258
        %1703 = vmatprep.subr.bf16.mxu0 0
        %1704 = vmatpush1.bf16.msra.mxu0 %v1259
        %1705 = vmatprep.subr.bf16.mxu0 0
        %1706 = vmatpush1.bf16.msra.mxu0 %v1260
        %1707 = vmatprep.subr.bf16.mxu0 0
        %1708 = vmatpush1.bf16.msra.mxu0 %v1261
        %1709 = vmatprep.subr.bf16.mxu0 0
        %1710 = vmatpush1.bf16.msra.mxu0 %v1262
        %1711 = vmatprep.subr.bf16.mxu0 0
        %1712 = vmatpush1.bf16.msra.mxu0 %v1263
        %1713 = vmatprep.subr.bf16.mxu0 0
        %1714 = vmatpush1.bf16.msra.mxu0 %v1264
        %1715 = vmatprep.subr.bf16.mxu0 0
        %1716 = vmatpush1.bf16.msra.mxu0 %v1265
        %1717 = vmatprep.subr.bf16.mxu0 0
        %1718 = vmatpush1.bf16.msra.mxu0 %v1266
        %1719 = vmatprep.subr.bf16.mxu0 0
        %1720 = vmatpush1.bf16.msra.mxu0 %v1267
        %1721 = vmatprep.mubr.bf16.mxu0 %v821
        %1722 = vmatmul.mubr.bf16.gmra.mrb[0].mxu0 %v820
        %v1723 = vpop.f32.mrb[0].mxu0
        %v1724 = vadd.f32 %v1563, %v1723
        %v1725 = vpop.f32.mrb[0].mxu0
        %v1726 = vpop.f32.mrb[0].mxu0
        %v1727 = vadd.f32 %v1566, %v1726
        %v1728 = vpop.f32.mrb[0].mxu0
        %1729 = vmatprep.mubr.bf16.mxu0 %v828
        %1730 = vmatmul.mubr.bf16.gmra.mrb[0].mxu0 %v827
        %v1731 = vpop.f32.mrb[0].mxu0
        %v1732 = vadd.f32 %v1571, %v1731
        %v1733 = vpop.f32.mrb[0].mxu0
        %v1734 = vpop.f32.mrb[0].mxu0
        %v1735 = vadd.f32 %v1574, %v1734
        %v1736 = vpop.f32.mrb[0].mxu0
        %1737 = vmatprep.mubr.bf16.mxu0 %v835
        %1738 = vmatmul.mubr.bf16.gmra.mrb[0].mxu0 %v834
        %v1739 = vpop.f32.mrb[0].mxu0
        %v1740 = vadd.f32 %v1579, %v1739
        %v1741 = vpop.f32.mrb[0].mxu0
        %v1742 = vpop.f32.mrb[0].mxu0
        %v1743 = vadd.f32 %v1582, %v1742
        %v1744 = vpop.f32.mrb[0].mxu0
        %1745 = vmatprep.mubr.bf16.mxu0 %v842
        %1746 = vmatmul.mubr.bf16.gmra.mrb[0].mxu0 %v841
        %v1747 = vpop.f32.mrb[0].mxu0
        %v1748 = vadd.f32 %v1587, %v1747
        %v1749 = vpop.f32.mrb[0].mxu0
        %v1750 = vpop.f32.mrb[0].mxu0
        %v1751 = vadd.f32 %v1590, %v1750
        %v1752 = vpop.f32.mrb[0].mxu0
        %1753 = vmatprep.mubr.bf16.mxu0 %v849
        %1754 = vmatmul.mubr.bf16.gmra.mrb[0].mxu0 %v848
        %v1755 = vpop.f32.mrb[0].mxu0
        %v1756 = vadd.f32 %v1595, %v1755
        %v1757 = vpop.f32.mrb[0].mxu0
        %v1758 = vpop.f32.mrb[0].mxu0
        %v1759 = vadd.f32 %v1598, %v1758
        %v1760 = vpop.f32.mrb[0].mxu0
        %1761 = vmatprep.mubr.bf16.mxu0 %v856
        %1762 = vmatmul.mubr.bf16.gmra.mrb[0].mxu0 %v855
        %v1763 = vpop.f32.mrb[0].mxu0
        %v1764 = vadd.f32 %v1603, %v1763
        %v1765 = vpop.f32.mrb[0].mxu0
        %v1766 = vpop.f32.mrb[0].mxu0
        %v1767 = vadd.f32 %v1606, %v1766
        %v1768 = vpop.f32.mrb[0].mxu0
        %1769 = vmatprep.mubr.bf16.mxu0 %v863
        %1770 = vmatmul.mubr.bf16.gmra.mrb[0].mxu0 %v862
        %v1771 = vpop.f32.mrb[0].mxu0
        %v1772 = vadd.f32 %v1611, %v1771
        %v1773 = vpop.f32.mrb[0].mxu0
        %v1774 = vpop.f32.mrb[0].mxu0
        %v1775 = vadd.f32 %v1614, %v1774
        %v1776 = vpop.f32.mrb[0].mxu0
        %1777 = vmatprep.mubr.bf16.mxu0 %v870
        %1778 = vmatmul.mubr.bf16.gmra.mrb[0].mxu0 %v869
        %v1779 = vpop.f32.mrb[0].mxu0
        %v1780 = vadd.f32 %v1619, %v1779
        %v1781 = vpop.f32.mrb[0].mxu0
        %v1782 = vpop.f32.mrb[0].mxu0
        %v1783 = vadd.f32 %v1622, %v1782
        %v1784 = vpop.f32.mrb[0].mxu0
        %1785 = vmatprep.mubr.bf16.mxu0 %v877
        %1786 = vmatmul.mubr.bf16.gmra.mrb[0].mxu0 %v876
        %v1787 = vpop.f32.mrb[0].mxu0
        %v1788 = vadd.f32 %v1627, %v1787
        %v1789 = vpop.f32.mrb[0].mxu0
        %v1790 = vpop.f32.mrb[0].mxu0
        %v1791 = vadd.f32 %v1630, %v1790
        %v1792 = vpop.f32.mrb[0].mxu0
        %1793 = vmatprep.mubr.bf16.mxu0 %v884
        %1794 = vmatmul.mubr.bf16.gmra.mrb[0].mxu0 %v883
        %v1795 = vpop.f32.mrb[0].mxu0
        %v1796 = vadd.f32 %v1635, %v1795
        %v1797 = vpop.f32.mrb[0].mxu0
        %v1798 = vpop.f32.mrb[0].mxu0
        %v1799 = vadd.f32 %v1638, %v1798
        %v1800 = vpop.f32.mrb[0].mxu0
        %1801 = vmatprep.mubr.bf16.mxu0 %v891
        %1802 = vmatmul.mubr.bf16.gmra.mrb[0].mxu0 %v890
        %v1803 = vpop.f32.mrb[0].mxu0
        %v1804 = vadd.f32 %v1643, %v1803
        %v1805 = vpop.f32.mrb[0].mxu0
        %v1806 = vpop.f32.mrb[0].mxu0
        %v1807 = vadd.f32 %v1646, %v1806
        %v1808 = vpop.f32.mrb[0].mxu0
        %1809 = vmatprep.mubr.bf16.mxu0 %v898
        %1810 = vmatmul.mubr.bf16.gmra.mrb[0].mxu0 %v897
        %v1811 = vpop.f32.mrb[0].mxu0
        %v1812 = vadd.f32 %v1651, %v1811
        %v1813 = vpop.f32.mrb[0].mxu0
        %v1814 = vpop.f32.mrb[0].mxu0
        %v1815 = vadd.f32 %v1654, %v1814
        %v1816 = vpop.f32.mrb[0].mxu0
        %1817 = vmatprep.mubr.bf16.mxu0 %v905
        %1818 = vmatmul.mubr.bf16.gmra.mrb[0].mxu0 %v904
        %v1819 = vpop.f32.mrb[0].mxu0
        %v1820 = vadd.f32 %v1659, %v1819
        %v1821 = vpop.f32.mrb[0].mxu0
        %v1822 = vpop.f32.mrb[0].mxu0
        %v1823 = vadd.f32 %v1662, %v1822
        %v1824 = vpop.f32.mrb[0].mxu0
        %1825 = vmatprep.mubr.bf16.mxu0 %v912
        %1826 = vmatmul.mubr.bf16.gmra.mrb[0].mxu0 %v911
        %v1827 = vpop.f32.mrb[0].mxu0
        %v1828 = vadd.f32 %v1667, %v1827
        %v1829 = vpop.f32.mrb[0].mxu0
        %v1830 = vpop.f32.mrb[0].mxu0
        %v1831 = vadd.f32 %v1670, %v1830
        %v1832 = vpop.f32.mrb[0].mxu0
        %1833 = vmatprep.mubr.bf16.mxu0 %v919
        %1834 = vmatmul.mubr.bf16.gmra.mrb[0].mxu0 %v918
        %v1835 = vpop.f32.mrb[0].mxu0
        %v1836 = vadd.f32 %v1675, %v1835
        %v1837 = vpop.f32.mrb[0].mxu0
        %v1838 = vpop.f32.mrb[0].mxu0
        %v1839 = vadd.f32 %v1678, %v1838
        %v1840 = vpop.f32.mrb[0].mxu0
        %1841 = vmatprep.mubr.bf16.mxu0 %v926
        %1842 = vmatmul.mubr.bf16.gmra.mrb[0].mxu0 %v925
        %v1843 = vpop.f32.mrb[0].mxu0
        %v1844 = vadd.f32 %v1683, %v1843
        %v1845 = vpop.f32.mrb[0].mxu0
        %v1846 = vpop.f32.mrb[0].mxu0
        %v1847 = vadd.f32 %v1686, %v1846
        %v1848 = vpop.f32.mrb[0].mxu0
        %1849 = vdwg.mxu0
        %1850 = vmatprep.subr.bf16.mxu0 0
        %1851 = vmatpush1.bf16.msra.mxu0 %v1268
        %1852 = vmatprep.subr.bf16.mxu0 0
        %1853 = vmatpush1.bf16.msra.mxu0 0
        %1854 = vmatprep.subr.bf16.mxu0 0
        %1855 = vmatpush1.bf16.msra.mxu0 0
        %1856 = vmatprep.subr.bf16.mxu0 0
        %1857 = vmatpush1.bf16.msra.mxu0 0
        %1858 = vmatprep.subr.bf16.mxu0 0
        %1859 = vmatpush1.bf16.msra.mxu0 0
        %1860 = vmatprep.subr.bf16.mxu0 0
        %1861 = vmatpush1.bf16.msra.mxu0 0
        %1862 = vmatprep.subr.bf16.mxu0 0
        %1863 = vmatpush1.bf16.msra.mxu0 0
        %1864 = vmatprep.subr.bf16.mxu0 0
        %1865 = vmatpush1.bf16.msra.mxu0 0
        %1866 = vmatprep.subr.bf16.mxu0 0
        %1867 = vmatpush1.bf16.msra.mxu0 0
        %1868 = vmatprep.subr.bf16.mxu0 0
        %1869 = vmatpush1.bf16.msra.mxu0 0
        %1870 = vmatprep.subr.bf16.mxu0 0
        %1871 = vmatpush1.bf16.msra.mxu0 0
        %1872 = vmatprep.subr.bf16.mxu0 0
        %1873 = vmatpush1.bf16.msra.mxu0 0
        %1874 = vmatprep.subr.bf16.mxu0 0
        %1875 = vmatpush1.bf16.msra.mxu0 0
        %1876 = vmatprep.subr.bf16.mxu0 0
        %1877 = vmatpush1.bf16.msra.mxu0 0
        %1878 = vmatprep.subr.bf16.mxu0 0
        %1879 = vmatpush1.bf16.msra.mxu0 0
        %1880 = vmatprep.subr.bf16.mxu0 0
        %1881 = vmatpush1.bf16.msra.mxu0 0
        %1882 = vmatprep.mubr.bf16.mxu0 0
        %1883 = vmatmul.mubr.bf16.gmra.mrb[0].mxu0 %v1320
        %v1884 = vpop.f32.mrb[0].mxu0
        %v1885 = vadd.f32 %v1724, %v1884
        %v1886 = vpop.f32.mrb[0].mxu0
        %v1887 = vpop.f32.mrb[0].mxu0
        %v1888 = vadd.f32 %v1727, %v1887
        %v1889 = vpop.f32.mrb[0].mxu0
        %1890 = vmatprep.mubr.bf16.mxu0 0
        %1891 = vmatmul.mubr.bf16.gmra.mrb[0].mxu0 %v1323
        %v1892 = vpop.f32.mrb[0].mxu0
        %v1893 = vadd.f32 %v1732, %v1892
        %v1894 = vpop.f32.mrb[0].mxu0
        %v1895 = vpop.f32.mrb[0].mxu0
        %v1896 = vadd.f32 %v1735, %v1895
        %v1897 = vpop.f32.mrb[0].mxu0
        %1898 = vmatprep.mubr.bf16.mxu0 0
        %1899 = vmatmul.mubr.bf16.gmra.mrb[0].mxu0 %v1326
        %v1900 = vpop.f32.mrb[0].mxu0
        %v1901 = vadd.f32 %v1740, %v1900
        %v1902 = vpop.f32.mrb[0].mxu0
        %v1903 = vpop.f32.mrb[0].mxu0
        %v1904 = vadd.f32 %v1743, %v1903
        %v1905 = vpop.f32.mrb[0].mxu0
        %1906 = vmatprep.mubr.bf16.mxu0 0
        %1907 = vmatmul.mubr.bf16.gmra.mrb[0].mxu0 %v1329
        %v1908 = vpop.f32.mrb[0].mxu0
        %v1909 = vadd.f32 %v1748, %v1908
        %v1910 = vpop.f32.mrb[0].mxu0
        %v1911 = vpop.f32.mrb[0].mxu0
        %v1912 = vadd.f32 %v1751, %v1911
        %v1913 = vpop.f32.mrb[0].mxu0
        %1914 = vmatprep.mubr.bf16.mxu0 0
        %1915 = vmatmul.mubr.bf16.gmra.mrb[0].mxu0 %v1332
        %v1916 = vpop.f32.mrb[0].mxu0
        %v1917 = vadd.f32 %v1756, %v1916
        %v1918 = vpop.f32.mrb[0].mxu0
        %v1919 = vpop.f32.mrb[0].mxu0
        %v1920 = vadd.f32 %v1759, %v1919
        %v1921 = vpop.f32.mrb[0].mxu0
        %1922 = vmatprep.mubr.bf16.mxu0 0
        %1923 = vmatmul.mubr.bf16.gmra.mrb[0].mxu0 %v1335
        %v1924 = vpop.f32.mrb[0].mxu0
        %v1925 = vadd.f32 %v1764, %v1924
        %v1926 = vpop.f32.mrb[0].mxu0
        %v1927 = vpop.f32.mrb[0].mxu0
        %v1928 = vadd.f32 %v1767, %v1927
        %v1929 = vpop.f32.mrb[0].mxu0
        %1930 = vmatprep.mubr.bf16.mxu0 0
        %1931 = vmatmul.mubr.bf16.gmra.mrb[0].mxu0 %v1338
        %v1932 = vpop.f32.mrb[0].mxu0
        %v1933 = vadd.f32 %v1772, %v1932
        %v1934 = vpop.f32.mrb[0].mxu0
        %v1935 = vpop.f32.mrb[0].mxu0
        %v1936 = vadd.f32 %v1775, %v1935
        %v1937 = vpop.f32.mrb[0].mxu0
        %1938 = vmatprep.mubr.bf16.mxu0 0
        %1939 = vmatmul.mubr.bf16.gmra.mrb[0].mxu0 %v1341
        %v1940 = vpop.f32.mrb[0].mxu0
        %v1941 = vadd.f32 %v1780, %v1940
        %v1942 = vpop.f32.mrb[0].mxu0
        %v1943 = vpop.f32.mrb[0].mxu0
        %v1944 = vadd.f32 %v1783, %v1943
        %v1945 = vpop.f32.mrb[0].mxu0
        %1946 = vmatprep.mubr.bf16.mxu0 0
        %1947 = vmatmul.mubr.bf16.gmra.mrb[0].mxu0 %v1344
        %v1948 = vpop.f32.mrb[0].mxu0
        %v1949 = vadd.f32 %v1788, %v1948
        %v1950 = vpop.f32.mrb[0].mxu0
        %v1951 = vpop.f32.mrb[0].mxu0
        %v1952 = vadd.f32 %v1791, %v1951
        %v1953 = vpop.f32.mrb[0].mxu0
        %1954 = vmatprep.mubr.bf16.mxu0 0
        %1955 = vmatmul.mubr.bf16.gmra.mrb[0].mxu0 %v1347
        %v1956 = vpop.f32.mrb[0].mxu0
        %v1957 = vadd.f32 %v1796, %v1956
        %v1958 = vpop.f32.mrb[0].mxu0
        %v1959 = vpop.f32.mrb[0].mxu0
        %v1960 = vadd.f32 %v1799, %v1959
        %v1961 = vpop.f32.mrb[0].mxu0
        %1962 = vmatprep.mubr.bf16.mxu0 0
        %1963 = vmatmul.mubr.bf16.gmra.mrb[0].mxu0 %v1350
        %v1964 = vpop.f32.mrb[0].mxu0
        %v1965 = vadd.f32 %v1804, %v1964
        %v1966 = vpop.f32.mrb[0].mxu0
        %v1967 = vpop.f32.mrb[0].mxu0
        %v1968 = vadd.f32 %v1807, %v1967
        %v1969 = vpop.f32.mrb[0].mxu0
        %1970 = vmatprep.mubr.bf16.mxu0 0
        %1971 = vmatmul.mubr.bf16.gmra.mrb[0].mxu0 %v1353
        %v1972 = vpop.f32.mrb[0].mxu0
        %v1973 = vadd.f32 %v1812, %v1972
        %v1974 = vpop.f32.mrb[0].mxu0
        %v1975 = vpop.f32.mrb[0].mxu0
        %v1976 = vadd.f32 %v1815, %v1975
        %v1977 = vpop.f32.mrb[0].mxu0
        %1978 = vmatprep.mubr.bf16.mxu0 0
        %1979 = vmatmul.mubr.bf16.gmra.mrb[0].mxu0 %v1356
        %v1980 = vpop.f32.mrb[0].mxu0
        %v1981 = vadd.f32 %v1820, %v1980
        %v1982 = vpop.f32.mrb[0].mxu0
        %v1983 = vpop.f32.mrb[0].mxu0
        %v1984 = vadd.f32 %v1823, %v1983
        %v1985 = vpop.f32.mrb[0].mxu0
        %1986 = vmatprep.mubr.bf16.mxu0 0
        %1987 = vmatmul.mubr.bf16.gmra.mrb[0].mxu0 %v1359
        %v1988 = vpop.f32.mrb[0].mxu0
        %v1989 = vadd.f32 %v1828, %v1988
        %v1990 = vpop.f32.mrb[0].mxu0
        %v1991 = vpop.f32.mrb[0].mxu0
        %v1992 = vadd.f32 %v1831, %v1991
        %v1993 = vpop.f32.mrb[0].mxu0
        %1994 = vmatprep.mubr.bf16.mxu0 0
        %1995 = vmatmul.mubr.bf16.gmra.mrb[0].mxu0 %v1362
        %v1996 = vpop.f32.mrb[0].mxu0
        %v1997 = vadd.f32 %v1836, %v1996
        %v1998 = vpop.f32.mrb[0].mxu0
        %v1999 = vpop.f32.mrb[0].mxu0
        %v2000 = vadd.f32 %v1839, %v1999
        %v2001 = vpop.f32.mrb[0].mxu0
        %2002 = vmatprep.mubr.bf16.mxu0 0
        %2003 = vmatmul.mubr.bf16.gmra.mrb[0].mxu0 %v1365
        %v2004 = vpop.f32.mrb[0].mxu0
        %v2005 = vadd.f32 %v1844, %v2004
        %v2006 = vpop.f32.mrb[0].mxu0
        %v2007 = vpop.f32.mrb[0].mxu0
        %v2008 = vadd.f32 %v1847, %v2007
        %v2009 = vpop.f32.mrb[0].mxu0
        %2010 = vdwg.mxu0
        %vm2011 = vcmp.gt.f32.partialorder %v1885, 0.0
        %vm2012 = vcmp.gt.f32.partialorder %v1888, 0.0
        %vm2013 = vcmp.gt.f32.partialorder %v1893, 0.0
        %vm2014 = vcmp.gt.f32.partialorder %v1896, 0.0
        %vm2015 = vcmp.gt.f32.partialorder %v1901, 0.0
        %vm2016 = vcmp.gt.f32.partialorder %v1904, 0.0
        %vm2017 = vcmp.gt.f32.partialorder %v1909, 0.0
        %vm2018 = vcmp.gt.f32.partialorder %v1912, 0.0
        %vm2019 = vcmp.gt.f32.partialorder %v1917, 0.0
        %vm2020 = vcmp.gt.f32.partialorder %v1920, 0.0
        %vm2021 = vcmp.gt.f32.partialorder %v1925, 0.0
        %vm2022 = vcmp.gt.f32.partialorder %v1928, 0.0
        %vm2023 = vcmp.gt.f32.partialorder %v1933, 0.0
        %vm2024 = vcmp.gt.f32.partialorder %v1936, 0.0
        %vm2025 = vcmp.gt.f32.partialorder %v1941, 0.0
        %vm2026 = vcmp.gt.f32.partialorder %v1944, 0.0
        %vm2027 = vcmp.gt.f32.partialorder %v1949, 0.0
        %vm2028 = vcmp.gt.f32.partialorder %v1952, 0.0
        %vm2029 = vcmp.gt.f32.partialorder %v1957, 0.0
        %vm2030 = vcmp.gt.f32.partialorder %v1960, 0.0
        %vm2031 = vcmp.gt.f32.partialorder %v1965, 0.0
        %vm2032 = vcmp.gt.f32.partialorder %v1968, 0.0
        %vm2033 = vcmp.gt.f32.partialorder %v1973, 0.0
        %vm2034 = vcmp.gt.f32.partialorder %v1976, 0.0
        %vm2035 = vcmp.gt.f32.partialorder %v1981, 0.0
        %vm2036 = vcmp.gt.f32.partialorder %v1984, 0.0
        %vm2037 = vcmp.gt.f32.partialorder %v1989, 0.0
        %vm2038 = vcmp.gt.f32.partialorder %v1992, 0.0
        %vm2039 = vcmp.gt.f32.partialorder %v1997, 0.0
        %vm2040 = vcmp.gt.f32.partialorder %v2000, 0.0
        %vm2041 = vcmp.gt.f32.partialorder %v2005, 0.0
        %vm2042 = vcmp.gt.f32.partialorder %v2008, 0.0
        %v2043 = vmul.f32 %v1885, 0.01
        %v2044 = vmul.f32 %v1888, 0.01
        %v2045 = vmul.f32 %v1893, 0.01
        %v2046 = vmul.f32 %v1896, 0.01
        %v2047 = vmul.f32 %v1901, 0.01
        %v2048 = vmul.f32 %v1904, 0.01
        %v2049 = vmul.f32 %v1909, 0.01
        %v2050 = vmul.f32 %v1912, 0.01
        %v2051 = vmul.f32 %v1917, 0.01
        %v2052 = vmul.f32 %v1920, 0.01
        %v2053 = vmul.f32 %v1925, 0.01
        %v2054 = vmul.f32 %v1928, 0.01
        %v2055 = vmul.f32 %v1933, 0.01
        %v2056 = vmul.f32 %v1936, 0.01
        %v2057 = vmul.f32 %v1941, 0.01
        %v2058 = vmul.f32 %v1944, 0.01
        %v2059 = vmul.f32 %v1949, 0.01
        %v2060 = vmul.f32 %v1952, 0.01
        %v2061 = vmul.f32 %v1957, 0.01
        %v2062 = vmul.f32 %v1960, 0.01
        %v2063 = vmul.f32 %v1965, 0.01
        %v2064 = vmul.f32 %v1968, 0.01
        %v2065 = vmul.f32 %v1973, 0.01
        %v2066 = vmul.f32 %v1976, 0.01
        %v2067 = vmul.f32 %v1981, 0.01
        %v2068 = vmul.f32 %v1984, 0.01
        %v2069 = vmul.f32 %v1989, 0.01
        %v2070 = vmul.f32 %v1992, 0.01
        %v2071 = vmul.f32 %v1997, 0.01
        %v2072 = vmul.f32 %v2000, 0.01
        %v2073 = vmul.f32 %v2005, 0.01
        %v2074 = vmul.f32 %v2008, 0.01
        %v2075 = vsel %vm2011, %v1885, %v2043
        %v2076 = vsel %vm2012, %v1888, %v2044
        %v2077 = vsel %vm2013, %v1893, %v2045
        %v2078 = vsel %vm2014, %v1896, %v2046
        %v2079 = vsel %vm2015, %v1901, %v2047
        %v2080 = vsel %vm2016, %v1904, %v2048
        %v2081 = vsel %vm2017, %v1909, %v2049
        %v2082 = vsel %vm2018, %v1912, %v2050
        %v2083 = vsel %vm2019, %v1917, %v2051
        %v2084 = vsel %vm2020, %v1920, %v2052
        %v2085 = vsel %vm2021, %v1925, %v2053
        %v2086 = vsel %vm2022, %v1928, %v2054
        %v2087 = vsel %vm2023, %v1933, %v2055
        %v2088 = vsel %vm2024, %v1936, %v2056
        %v2089 = vsel %vm2025, %v1941, %v2057
        %v2090 = vsel %vm2026, %v1944, %v2058
        %v2091 = vsel %vm2027, %v1949, %v2059
        %v2092 = vsel %vm2028, %v1952, %v2060
        %v2093 = vsel %vm2029, %v1957, %v2061
        %v2094 = vsel %vm2030, %v1960, %v2062
        %v2095 = vsel %vm2031, %v1965, %v2063
        %v2096 = vsel %vm2032, %v1968, %v2064
        %v2097 = vsel %vm2033, %v1973, %v2065
        %v2098 = vsel %vm2034, %v1976, %v2066
        %v2099 = vsel %vm2035, %v1981, %v2067
        %v2100 = vsel %vm2036, %v1984, %v2068
        %v2101 = vsel %vm2037, %v1989, %v2069
        %v2102 = vsel %vm2038, %v1992, %v2070
        %v2103 = vsel %vm2039, %v1997, %v2071
        %v2104 = vsel %vm2040, %v2000, %v2072
        %v2105 = vsel %vm2041, %v2005, %v2073
        %v2106 = vsel %vm2042, %v2008, %v2074
        %v2107 = vld [vmem:[%s3] sm:$0x1]
        %s2108 = sld [smem:[#allocation2]]
        %v2109 = vstv %s2108
        %2110 = vmatprep.subr.mxu0 0.0
        %2111 = vmatpush1.xpose.msra.mxu0 %v2075
        %2112 = vmatprep.subr.mxu0 0.0
        %2113 = vmatpush1.xpose.msra.mxu0 %v2076
        %2114 = vmatprep.subr.mxu0 0.0
        %2115 = vmatpush1.xpose.msra.mxu0 %v2077
        %2116 = vmatprep.subr.mxu0 0.0
        %2117 = vmatpush1.xpose.msra.mxu0 %v2078
        %2118 = vmatprep.subr.mxu0 0.0
        %2119 = vmatpush1.xpose.msra.mxu0 %v2079
        %2120 = vmatprep.subr.mxu0 0.0
        %2121 = vmatpush1.xpose.msra.mxu0 %v2080
        %2122 = vmatprep.subr.mxu0 0.0
        %2123 = vmatpush1.xpose.msra.mxu0 %v2081
        %2124 = vmatprep.subr.mxu0 0.0
        %2125 = vmatpush1.xpose.msra.mxu0 %v2082
        %2126 = vmatprep.subr.mxu0 0.0
        %2127 = vmatpush1.xpose.msra.mxu0 %v2083
        %2128 = vmatprep.subr.mxu0 0.0
        %2129 = vmatpush1.xpose.msra.mxu0 %v2084
        %2130 = vmatprep.subr.mxu0 0.0
        %2131 = vmatpush1.xpose.msra.mxu0 %v2085
        %2132 = vmatprep.subr.mxu0 0.0
        %2133 = vmatpush1.xpose.msra.mxu0 %v2086
        %2134 = vmatprep.subr.mxu0 0.0
        %2135 = vmatpush1.xpose.msra.mxu0 %v2087
        %2136 = vmatprep.subr.mxu0 0.0
        %2137 = vmatpush1.xpose.msra.mxu0 %v2088
        %2138 = vmatprep.subr.mxu0 0.0
        %2139 = vmatpush1.xpose.msra.mxu0 %v2089
        %2140 = vmatprep.subr.mxu0 0.0
        %2141 = vmatpush1.xpose.msra.mxu0 %v2090
        %2142 = vmatprep.subr.mxu0 0.0
        %2143 = vmatpush1.xpose.msra.mxu0 %v2091
        %2144 = vmatprep.subr.mxu0 0.0
        %2145 = vmatpush1.xpose.msra.mxu0 %v2092
        %2146 = vmatprep.subr.mxu0 0.0
        %2147 = vmatpush1.xpose.msra.mxu0 %v2093
        %2148 = vmatprep.subr.mxu0 0.0
        %2149 = vmatpush1.xpose.msra.mxu0 %v2094
        %2150 = vmatprep.subr.mxu0 0.0
        %2151 = vmatpush1.xpose.msra.mxu0 %v2095
        %2152 = vmatprep.subr.mxu0 0.0
        %2153 = vmatpush1.xpose.msra.mxu0 %v2096
        %2154 = vmatprep.subr.mxu0 0.0
        %2155 = vmatpush1.xpose.msra.mxu0 %v2097
        %2156 = vmatprep.subr.mxu0 0.0
        %2157 = vmatpush1.xpose.msra.mxu0 %v2098
        %2158 = vmatprep.subr.mxu0 0.0
        %2159 = vmatpush1.xpose.msra.mxu0 %v2099
        %2160 = vmatprep.subr.mxu0 0.0
        %2161 = vmatpush1.xpose.msra.mxu0 %v2100
        %2162 = vmatprep.subr.mxu0 0.0
        %2163 = vmatpush1.xpose.msra.mxu0 %v2101
        %2164 = vmatprep.subr.mxu0 0.0
        %2165 = vmatpush1.xpose.msra.mxu0 %v2102
        %2166 = vmatprep.subr.mxu0 0.0
        %2167 = vmatpush1.xpose.msra.mxu0 %v2103
        %2168 = vmatprep.subr.mxu0 0.0
        %2169 = vmatpush1.xpose.msra.mxu0 %v2104
        %2170 = vmatprep.subr.mxu0 0.0
        %2171 = vmatpush1.xpose.msra.mxu0 %v2105
        %2172 = vmatprep.subr.mxu0 0.0
        %2173 = vmatpush1.xpose.msra.mxu0 %v2106
        %2174 = vmatprep.mubr.f32.mxu0 0.0
        %2175 = vmatmul.mubr.f32.gmra.mrb[0].mxu0 %v2107
        %v2176 = vpop.f32.mrb[0].mxu0
        %v2177 = vadd.f32 %v2109, %v2176
        %v2178 = vpop.f32.mrb[0].mxu0
        %v2179 = vadd.f32 %v2109, %v2178
        %2180 = vdwg.mxu0
        %v2181 = vand.u32 2147483647, %v2177
        %v2182 = vand.u32 2147483647, %v2179
        %v2183 = vsub.f32 0.0, %v2181
        %v2184 = vsub.f32 0.0, %v2182
        %v2185 = vmul.f32 %v2183, 1.442695
        %v2186 = vpow.pop %v2185
        %v2187 = vmul.f32 %v2184, 1.442695
        %v2188 = vpow.pop %v2187
        %v2189 = vadd.f32 %v2186, 1.0
        %v2190 = vadd.f32 %v2188, 1.0
        %v2191 = vrcp.pop %v2189
        %v2192 = vrcp.pop %v2190
        %vm2193 = vcmp.ge.f32.partialorder %v2177, 0.0
        %vm2194 = vcmp.ge.f32.partialorder %v2179, 0.0
        %v2195 = vsub.f32 1.0, %v2191
        %v2196 = vsub.f32 1.0, %v2192
        %v2197 = vsel %vm2193, %v2191, %v2195
        %v2198 = vsel %vm2194, %v2192, %v2196
        %v2201 = vcombine.low %v2197, %v2198
        %v2203 = vunpack.c.l.s4 1966171168
        %v2204 = vunpack.c.0.s8 %v2203
        %v2205 = vlaneseq
        %v2206 = vshrl.u32 %v2205, 7
        %v2207 = vsub.s32 %v2204, %v2206
        %v2208 = vrot.slane %v2201, %v2207
        %v2210 = vunpack.c.l.s4 1966171168
        %v2211 = vunpack.c.0.s8 %v2210
        %v2212 = vlaneseq
        %v2213 = vshrl.u32 %v2212, 7
        %v2214 = vsub.s32 %v2211, %v2213
        %v2215 = vrot.slane %v2208, %v2214
        %v2217 = vlaneseq
        %vm2218 = vcmp.ge.s32.totalorder %v2217, 0
        %vm2219 = vcmp.lt.s32.totalorder %v2217, 256
        %vm2220 = vmand %vm2218, %vm2219
        %2221 = vst.msk [vmem:[%s221] sm:$0x3] %vm2220, %v2215
        %s2222 = sand.u32 %s138, 1
        %s2223 = scalar_lea.sflag [#allocation4], %s2222
        %s2224 = sand.u32 %s138, 1
        %s2225 = smul.addr %s2224, 2
        %s2226 = scalar_lea.vmem [#allocation3], %s2225
        // Predicated region
        $region41: #{tpu_custom_call.1} parent=39 // pred_check
          %p2227 = pneg %p148
        $region42: #{tpu_custom_call.1} parent=39 // pred_check_branch
          %2229 = sbr.rel (%p2227) target = $region44
        $region43: #{tpu_custom_call.1} parent=39 // pred_region
          %s2230 = smul.u32 2, %s20
          %s2232 = ssub.s32 32, 32
          %2233 = vsyncadd %s2223, %s2232
          %s2234 = smul.addr %s2230, 16
          %s2235 = scalar_lea.hbm %s5, %s2234
          %s2237 = sshll.u32 %s2226, 4
          %s2238 = int_to_ptr.vmem [resolvable:$true] %s2237
          %2240 = dma.vmem_to_hbm [thread:$0]  %s2238, 32, %s2235, %s2223
        $region44: #{tpu_custom_call.1} parent=39 // pred_fallthru
          _
      $region40: #{tpu_custom_call.1} parent=5 // pred_fallthru
        _
      %p2241 = scmp.le.s32.totalorder 2, %s15
      // Predicated region
      $region45: #{tpu_custom_call.1} parent=5 // pred_check
        %p2242 = pneg %p2241
      $region46: #{tpu_custom_call.1} parent=5 // pred_check_branch
        %2244 = sbr.rel (%p2242) target = $region48
      $region47: #{tpu_custom_call.1} parent=5 // pred_region
        %s2245 = ssub.s32 %s15, 2
        // Predicated region
        $region49: #{tpu_custom_call.1} parent=47 // pred_check
          %p2246 = pneg %p154
        $region50: #{tpu_custom_call.1} parent=47 // pred_check_branch
          %2248 = sbr.rel (%p2246) target = $region52
        $region51: #{tpu_custom_call.1} parent=47 // pred_region
          %s2249 = sand.u32 %s139, 1
          %s2250 = scalar_lea.sflag [#allocation4], %s2249
          %s2251 = sand.u32 %s139, 1
          %s2252 = smul.addr %s2251, 2
          %s2253 = scalar_lea.vmem [#allocation3], %s2252
          %2254 = dma.done %s2250, 32
        $region52: #{tpu_custom_call.1} parent=47 // pred_fallthru
          _
      $region48: #{tpu_custom_call.1} parent=5 // pred_fallthru
        _
    $region6: #{tpu_custom_call.1} parent=1 // loop_footer
      %s19 = sadd.s32 1, %s15
    $region7: #{tpu_custom_call.1} parent=1 // loop_footer_branch
      %14 = sbr.rel target = $region3
    $region8: #{tpu_custom_call.1} parent=1 // loop_exit
      _
    %2255 = vsyncpa [#allocation4], 1
    %s2256 = scalar_lea.sflag [#allocation4], 1
    %2257 = vsyncpa %s2256, 1

</llo_original>
